<compile_context>
chip_gen: v7x
topology: tpu7x:2x2x1
jax: 0.10.0
libtpu: 0.0.40
codegen_flags: <defaults>
</compile_context>

<pallas_src>
import jax
import jax.numpy as jnp
from jax import lax
from jax.experimental import pallas as pl
from jax.experimental.pallas import tpu as pltpu
import numpy as np

# ---------------------------------------------------------------- config ---
HIDDEN = 32          # hidden_size
UNITS = 10           # attention_units (module default)
NUM_FEATURES = 4     # config.NUM_FEATURES
BATCH = 2
SEQ = 8
STEPS = 6            # timesteps for the fused rollout demo
LANES = 128          # padded lane width; == 4*HIDDEN for HIDDEN=32

HIGHEST = lax.Precision.HIGHEST

_VMEM = pl.BlockSpec(memory_space=pltpu.MemorySpace.VMEM)


# -------------------------------------------------------- param packing ----
def prepare_params(p):
    """One-time wrapper-side re-layout into 2 dense, lane-padded blocks.

    WP   (2H+16, 128): rows [0:H)=W1_pad, [H:2H)=Wd(=Wih[:H]), [2H:2H+F)=Wx
                       (=Wih[H:]), row 2H+8 = V_pad, row 2H+9 = bih+bhh.
    WHH2 (H, 256):     [W2_pad | Whh]  -> fused ht matmul, lane-sliced in kernel.
    Padded columns of W1/W2 and padded lanes of V are zero, so the lane
    reduce over the padded attention-unit axis is unchanged.
    """
    H, U = p['W1'].shape
    F = p['Wih'].shape[0] - H
    GH = p['Whh'].shape[1]                      # 4H
    assert GH == LANES, "packing below assumes 4*hidden == 128"
    assert U <= LANES and F <= 8

    w1_pad = jnp.zeros((H, LANES), jnp.float32).at[:, :U].set(p['W1'])
    w2_pad = jnp.zeros((H, LANES), jnp.float32).at[:, :U].set(p['W2'])
    whh2 = jnp.concatenate([w2_pad, p['Whh']], axis=1)                  # (H, 256)

    wp = jnp.zeros((2 * H + 16, LANES), jnp.float32)
    wp = wp.at[0:H, :].set(w1_pad)
    wp = wp.at[H:2 * H, :].set(p['Wih'][:H])                            # Wd (multiplies di)
    wp = wp.at[2 * H:2 * H + F, :].set(p['Wih'][H:])                    # Wx (multiplies x)
    wp = wp.at[2 * H + 8, :U].set(p['V'][0])                            # V (zero beyond U)
    wp = wp.at[2 * H + 9, :].set(p['bih'][0] + p['bhh'][0])             # pre-summed bias
    return {'WP': wp, 'WHH2': whh2}


def _unpack(wp_ref, H, F):
    """Static, 8-aligned sublane slices of the packed parameter block."""
    w1 = wp_ref[0:H, :]                    # (H, 128)  W1 (zero-padded cols)
    wd = wp_ref[H:2 * H, :]                # (H, 128)  multiplies di
    wx = wp_ref[2 * H:2 * H + F, :]        # (F, 128)  multiplies x
    v = wp_ref[2 * H + 8:2 * H + 9, :]     # (1, 128)  V (zero beyond U)
    bias = wp_ref[2 * H + 9:2 * H + 10, :]  # (1, 128)  bih + bhh
    return w1, wd, wx, v, bias


# ------------------------------------------------------- shared step math --
def _step(w1e, enc, ht, ct, xw, whh2, wd, v, bias):
    """One decoder step on already-loaded VMEM values.

    w1e (B,S,128) precomputed enc@W1_pad;  enc (B,S,H);  ht,ct (B,H)
    xw (B,128) precomputed x@Wx;  whh2 (H,256);  wd (H,128);
    v,bias (1,128).   returns (pre-softmax scores (B,S), h_new, c_new).
    """
    H = ht.shape[-1]
    GH = 4 * H

    # fused ht @ [W2_pad | Whh] : one 256-wide MXU pass, lane-sliced
    hw = jnp.dot(ht, whh2, preferred_element_type=jnp.float32, precision=HIGHEST)
    w2h = hw[:, :GH]                                        # attention projection (pad lanes 0)
    gh = hw[:, GH:]                                         # ht @ Whh  (B, 4H)

    uj = jnp.tanh(w1e + w2h[:, None, :])                    # (B, S, 128), pad lanes tanh(0)=0
    # degenerate matvec -> VPU multiply + lane reduce (padded lanes of v are 0)
    scores = jnp.sum(uj * v[:, None, :], axis=-1)           # (B, S)

    # softmax over the sequence axis (dim=1 in PyTorch); exact division
    m = jnp.max(scores, axis=1, keepdims=True)
    e = jnp.exp(scores - m)
    aj = e / jnp.sum(e, axis=1, keepdims=True)              # (B, S)

    # context: VPU multiply + sublane reduce (no MXU)
    di = jnp.sum(aj[:, :, None] * enc, axis=1)              # (B, H)

    # LSTM gates: di@Wd + ht@Whh + x@Wx + (bih+bhh)   (no in-kernel concat)
    gates = (jnp.dot(di, wd, preferred_element_type=jnp.float32, precision=HIGHEST)
             + gh + xw + bias)                              # (B, 4H)

    # PyTorch gate order: i, f, g, o
    i_g = jax.nn.sigmoid(gates[:, 0 * H:1 * H])
    f_g = jax.nn.sigmoid(gates[:, 1 * H:2 * H])
    g_g = jnp.tanh(gates[:, 2 * H:3 * H])
    o_g = jax.nn.sigmoid(gates[:, 3 * H:4 * H])

    c_new = f_g * ct + i_g * g_g
    h_new = o_g * jnp.tanh(c_new)
    return scores, h_new, c_new


# ------------------------------------------------------ single-step kernel --
def decoder_step_kernel(enc_ref, encf_ref, h_ref, c_ref, x_ref,
                        wp_ref, whh2_ref, out_ref):
    B, S, H = enc_ref.shape
    F = x_ref.shape[-1]
    w1, wd, wx, v, bias = _unpack(wp_ref, H, F)

    # enc @ W1 on the wrapper-pre-flattened (B*S,H) copy; the (B*S,128)->(B,S,128)
    # regroup splits sublanes at an 8-aligned boundary (S==8) -> no relayout.
    w1e = jnp.dot(encf_ref[...], w1, preferred_element_type=jnp.float32,
                  precision=HIGHEST).reshape(B, S, wp_ref.shape[-1])
    xw = jnp.dot(x_ref[...], wx, preferred_element_type=jnp.float32,
                 precision=HIGHEST)                         # (B, 4H)

    scores, h_new, c_new = _step(w1e, enc_ref[...], h_ref[...], c_ref[...],
                                 xw, whh2_ref[...], wd, v, bias)

    # one lane-dense output slab: [scores | h | c | 0...]  (single unmasked store)
    slab = jnp.concatenate([scores, h_new, c_new], axis=-1)
    pad = out_ref.shape[-1] - slab.shape[-1]
    if pad:
        slab = jnp.concatenate([slab, jnp.zeros((B, pad), jnp.float32)], axis=-1)
    out_ref[...] = slab


# -------------------------------------------------------- rollout kernel ---
def decoder_rollout_kernel(enc_ref, encf_ref, h0_ref, c0_ref, xsf_ref,
                           wp_ref, whh2_ref, att_ref, hc_ref):
    """T decoder steps fused into ONE kernel invocation (no grid).

    The recurrence is fully unrolled (T static); h/c stay in vregs, all inputs
    and both outputs are VMEM-resident, the loop-invariant enc@W1 and the
    precomputable x@Wx matmuls are hoisted out of the per-step path.
    """
    B, S, H = enc_ref.shape
    TB, F = xsf_ref.shape
    T = TB // B

    w1, wd, wx, v, bias = _unpack(wp_ref, H, F)
    enc = enc_ref[...]
    whh2 = whh2_ref[...]

    # hoisted: enc @ W1 (does not depend on t)
    w1e = jnp.dot(encf_ref[...], w1, preferred_element_type=jnp.float32,
                  precision=HIGHEST).reshape(B, S, wp_ref.shape[-1])
    # hoisted: x_t @ Wx for all steps as one (T*B,F)@(F,4H) matmul
    xw_all = jnp.dot(xsf_ref[...], wx, preferred_element_type=jnp.float32,
                     precision=HIGHEST)                     # (T*B, 4H)

    h = h0_ref[...]
    c = c0_ref[...]
    for t in range(T):                                      # fully unrolled (T static)
        scores, h, c = _step(w1e, enc, h, c,
                             xw_all[t * B:(t + 1) * B, :], whh2, wd, v, bias)
        att_ref[t] = scores                                 # resident output, per-step row
    hc_ref[0] = h                                           # written once, as rows
    hc_ref[1] = c


# ------------------------------------------------------------- wrappers ----
def decoder_forward(x, hidden, encoder_out, packed):
    """Mirrors Decoder.forward (single step).

    x (B,1,F); hidden=(h,c) each (1,B,H); encoder_out (B,S,H)
    returns ((h_new, c_new) each (1,B,H), att_w (B,S) pre-softmax scores)
    """
    h0, c0 = hidden
    B, S, H = encoder_out.shape
    out_w = max(LANES, S + 2 * H)

    out = pl.pallas_call(
        decoder_step_kernel,
        out_shape=jax.ShapeDtypeStruct((B, out_w), jnp.float32),
        in_specs=[_VMEM] * 7,
        out_specs=_VMEM,
    )(encoder_out, encoder_out.reshape(B * S, H), h0[0], c0[0], x[:, 0, :],
      packed['WP'], packed['WHH2'])

    att_w = out[:, :S]
    h_new = out[:, S:S + H]
    c_new = out[:, S + H:S + 2 * H]
    return (h_new[None], c_new[None]), att_w


def decoder_rollout(xs, hidden, encoder_out, packed):
    """T decoder steps fused into ONE pallas_call (no grid, unrolled in-kernel).

    xs (T,B,F); hidden=(h,c) each (1,B,H); encoder_out (B,S,H)
    returns ((h_T, c_T) each (1,B,H), att_all (T,B,S))
    """
    h0, c0 = hidden
    T, B, F = xs.shape
    _, S, H = encoder_out.shape

    att_all, hc = pl.pallas_call(
        decoder_rollout_kernel,
        out_shape=(jax.ShapeDtypeStruct((T, B, S), jnp.float32),
                   jax.ShapeDtypeStruct((2, B, H), jnp.float32)),
        in_specs=[_VMEM] * 7,
        out_specs=(_VMEM, _VMEM),
    )(encoder_out, encoder_out.reshape(B * S, H), h0[0], c0[0],
      xs.reshape(T * B, F), packed['WP'], packed['WHH2'])

    return (hc[0][None], hc[1][None]), att_all


# -------------------------------------------------------- pure-JAX refs ----
def decoder_reference(x, hidden, encoder_out, p):
    h0, c0 = hidden
    ht, ct = h0[0], c0[0]
    H = ht.shape[-1]
    w1e = jnp.einsum('bsh,hu->bsu', encoder_out, p['W1'], precision=HIGHEST)
    w2h = jnp.dot(ht, p['W2'], precision=HIGHEST)
    uj = jnp.tanh(w1e + w2h[:, None, :])
    scores = jnp.einsum('bsu,u->bs', uj, p['V'][0], precision=HIGHEST)  # pre-softmax att_w
    aj = jax.nn.softmax(scores, axis=1)
    di = jnp.einsum('bs,bsh->bh', aj, encoder_out, precision=HIGHEST)
    xin = jnp.concatenate([di, x[:, 0, :]], axis=1)
    gates = (jnp.dot(xin, p['Wih'], precision=HIGHEST)
             + jnp.dot(ht, p['Whh'], precision=HIGHEST)
             + p['bih'][0] + p['bhh'][0])
    i_g = jax.nn.sigmoid(gates[:, 0 * H:1 * H])
    f_g = jax.nn.sigmoid(gates[:, 1 * H:2 * H])
    g_g = jnp.tanh(gates[:, 2 * H:3 * H])
    o_g = jax.nn.sigmoid(gates[:, 3 * H:4 * H])
    c_new = f_g * ct + i_g * g_g
    h_new = o_g * jnp.tanh(c_new)
    return (h_new[None], c_new[None]), scores


def rollout_reference(xs, hidden, encoder_out, p):
    atts = []
    for t in range(xs.shape[0]):
        hidden, att = decoder_reference(xs[t][:, None, :], hidden, encoder_out, p)
        atts.append(att)
    return hidden, jnp.stack(atts, axis=0)


# ------------------------------------------------------------------- main --
if __name__ == "__main__":
    key = jax.random.PRNGKey(0)
    ks = jax.random.split(key, 12)

    scale = 0.1
    params = {
        # Attention: W1, W2 : Linear(hidden, units, bias=False); V : Linear(units, 1, bias=False)
        'W1': scale * jax.random.normal(ks[0], (HIDDEN, UNITS), jnp.float32),
        'W2': scale * jax.random.normal(ks[1], (HIDDEN, UNITS), jnp.float32),
        'V':  scale * jax.random.normal(ks[2], (1, UNITS), jnp.float32),
        # LSTM(hidden + NUM_FEATURES, hidden): stored transposed vs. nn.LSTM
        'Wih': scale * jax.random.normal(ks[3], (HIDDEN + NUM_FEATURES, 4 * HIDDEN), jnp.float32),
        'Whh': scale * jax.random.normal(ks[4], (HIDDEN, 4 * HIDDEN), jnp.float32),
        'bih': scale * jax.random.normal(ks[5], (1, 4 * HIDDEN), jnp.float32),
        'bhh': scale * jax.random.normal(ks[6], (1, 4 * HIDDEN), jnp.float32),
    }
    packed = prepare_params(params)

    x = jax.random.normal(ks[7], (BATCH, 1, NUM_FEATURES), jnp.float32)
    h0 = jax.random.normal(ks[8], (1, BATCH, HIDDEN), jnp.float32)
    c0 = jax.random.normal(ks[9], (1, BATCH, HIDDEN), jnp.float32)
    encoder_out = jax.random.normal(ks[10], (BATCH, SEQ, HIDDEN), jnp.float32)
    xs = jax.random.normal(ks[11], (STEPS, BATCH, NUM_FEATURES), jnp.float32)

    # ---- single step (matches Decoder.forward exactly) ----------------------
    (h_new, c_new), att_w = decoder_forward(x, (h0, c0), encoder_out, packed)
    jax.block_until_ready((h_new, c_new, att_w))

    (h_ref, c_ref), att_ref = decoder_reference(x, (h0, c0), encoder_out, params)
    np.testing.assert_allclose(np.asarray(h_new), np.asarray(h_ref), rtol=1e-5, atol=1e-5)
    np.testing.assert_allclose(np.asarray(c_new), np.asarray(c_ref), rtol=1e-5, atol=1e-5)
    np.testing.assert_allclose(np.asarray(att_w), np.asarray(att_ref), rtol=1e-5, atol=1e-5)

    # ---- fused multi-step rollout (one kernel invocation, unrolled loop) ----
    (h_T, c_T), att_all = decoder_rollout(xs, (h0, c0), encoder_out, packed)
    jax.block_until_ready((h_T, c_T, att_all))

    (h_Tr, c_Tr), att_all_r = rollout_reference(xs, (h0, c0), encoder_out, params)
    np.testing.assert_allclose(np.asarray(h_T), np.asarray(h_Tr), rtol=2e-5, atol=2e-5)
    np.testing.assert_allclose(np.asarray(c_T), np.asarray(c_Tr), rtol=2e-5, atol=2e-5)
    np.testing.assert_allclose(np.asarray(att_all), np.asarray(att_all_r), rtol=2e-5, atol=2e-5)

    print("KERNEL_OK")
</pallas_src>

<mosaic_0001>
module attributes {stable_mosaic.version = 11 : i64} {
  func.func @decoder_step_kernel(%arg0: memref<2x8x32xf32, #tpu.memory_space<vmem>>, %arg1: memref<16x32xf32, #tpu.memory_space<vmem>>, %arg2: memref<2x32xf32, #tpu.memory_space<vmem>>, %arg3: memref<2x32xf32, #tpu.memory_space<vmem>>, %arg4: memref<2x4xf32, #tpu.memory_space<vmem>>, %arg5: memref<80x128xf32, #tpu.memory_space<vmem>>, %arg6: memref<32x256xf32, #tpu.memory_space<vmem>>, %arg7: memref<2x128xf32, #tpu.memory_space<vmem>>) attributes {dimension_semantics = [], scalar_prefetch = 0 : i64, scratch_operands = 0 : i64, tpu.core_type = #tpu.core_type<tc>} {
    %c0 = arith.constant 0 : index
    %c0_0 = arith.constant 0 : index
    %0 = vector.load %arg5[%c0, %c0_0] : memref<80x128xf32, #tpu.memory_space<vmem>>, vector<32x128xf32>
    %c32 = arith.constant 32 : index
    %c0_1 = arith.constant 0 : index
    %1 = vector.load %arg5[%c32, %c0_1] : memref<80x128xf32, #tpu.memory_space<vmem>>, vector<32x128xf32>
    %c64 = arith.constant 64 : index
    %c0_2 = arith.constant 0 : index
    %2 = vector.load %arg5[%c64, %c0_2] : memref<80x128xf32, #tpu.memory_space<vmem>>, vector<4x128xf32>
    %c72 = arith.constant 72 : index
    %c0_3 = arith.constant 0 : index
    %3 = vector.load %arg5[%c72, %c0_3] : memref<80x128xf32, #tpu.memory_space<vmem>>, vector<1x128xf32>
    %c73 = arith.constant 73 : index
    %c0_4 = arith.constant 0 : index
    %4 = vector.load %arg5[%c73, %c0_4] : memref<80x128xf32, #tpu.memory_space<vmem>>, vector<1x128xf32>
    %c0_5 = arith.constant 0 : index
    %c0_6 = arith.constant 0 : index
    %5 = vector.load %arg1[%c0_5, %c0_6] : memref<16x32xf32, #tpu.memory_space<vmem>>, vector<16x32xf32>
    %cst = arith.constant dense<0.000000e+00> : vector<16x128xf32>
    %6 = tpu.matmul %5, %0, %cst {dimension_numbers = #tpu.dot_dimension_numbers<[1], [0], [0], [1], [0, 0, 1, 1], [], []>, precision = #tpu.contract_precision<fp32>} : vector<16x32xf32>, vector<32x128xf32>, vector<16x128xf32> -> vector<16x128xf32>
    %7 = vector.shape_cast %6 : vector<16x128xf32> to vector<2x8x128xf32>
    %c0_7 = arith.constant 0 : index
    %c0_8 = arith.constant 0 : index
    %8 = vector.load %arg4[%c0_7, %c0_8] : memref<2x4xf32, #tpu.memory_space<vmem>>, vector<2x4xf32>
    %cst_9 = arith.constant dense<0.000000e+00> : vector<2x128xf32>
    %9 = tpu.matmul %8, %2, %cst_9 {dimension_numbers = #tpu.dot_dimension_numbers<[1], [0], [0], [1], [0, 0, 1, 1], [], []>, precision = #tpu.contract_precision<fp32>} : vector<2x4xf32>, vector<4x128xf32>, vector<2x128xf32> -> vector<2x128xf32>
    %c0_10 = arith.constant 0 : index
    %c0_11 = arith.constant 0 : index
    %c0_12 = arith.constant 0 : index
    %10 = vector.load %arg0[%c0_10, %c0_11, %c0_12] : memref<2x8x32xf32, #tpu.memory_space<vmem>>, vector<2x8x32xf32>
    %c0_13 = arith.constant 0 : index
    %c0_14 = arith.constant 0 : index
    %11 = vector.load %arg2[%c0_13, %c0_14] : memref<2x32xf32, #tpu.memory_space<vmem>>, vector<2x32xf32>
    %c0_15 = arith.constant 0 : index
    %c0_16 = arith.constant 0 : index
    %12 = vector.load %arg3[%c0_15, %c0_16] : memref<2x32xf32, #tpu.memory_space<vmem>>, vector<2x32xf32>
    %c0_17 = arith.constant 0 : index
    %c0_18 = arith.constant 0 : index
    %13 = vector.load %arg6[%c0_17, %c0_18] : memref<32x256xf32, #tpu.memory_space<vmem>>, vector<32x256xf32>
    %cst_19 = arith.constant dense<0.000000e+00> : vector<2x256xf32>
    %14 = tpu.matmul %11, %13, %cst_19 {dimension_numbers = #tpu.dot_dimension_numbers<[1], [0], [0], [1], [0, 0, 1, 1], [], []>, precision = #tpu.contract_precision<fp32>} : vector<2x32xf32>, vector<32x256xf32>, vector<2x256xf32> -> vector<2x256xf32>
    %15 = vector.extract_strided_slice %14 {offsets = [0, 0], sizes = [2, 128], strides = [1, 1]} : vector<2x256xf32> to vector<2x128xf32>
    %16 = vector.extract_strided_slice %14 {offsets = [0, 128], sizes = [2, 128], strides = [1, 1]} : vector<2x256xf32> to vector<2x128xf32>
    %17 = vector.shape_cast %15 : vector<2x128xf32> to vector<2x1x128xf32>
    %18 = vector.broadcast %17 : vector<2x1x128xf32> to vector<2x8x128xf32>
    %19 = arith.addf %7, %18 : vector<2x8x128xf32>
    %20 = math.tanh %19 : vector<2x8x128xf32>
    %21 = vector.shape_cast %3 : vector<1x128xf32> to vector<1x1x128xf32>
    %22 = vector.broadcast %21 : vector<1x1x128xf32> to vector<2x8x128xf32>
    %23 = arith.mulf %20, %22 : vector<2x8x128xf32>
    %cst_20 = arith.constant dense<0.000000e+00> : vector<2x8xf32>
    %24 = vector.multi_reduction <add>, %23, %cst_20 [2] : vector<2x8x128xf32> to vector<2x8xf32>
    %cst_21 = arith.constant dense<0xFF800000> : vector<2xf32>
    %25 = vector.multi_reduction <maximumf>, %24, %cst_21 [1] : vector<2x8xf32> to vector<2xf32>
    %26 = vector.shape_cast %25 : vector<2xf32> to vector<2x1xf32>
    %27 = vector.broadcast %26 : vector<2x1xf32> to vector<2x8xf32>
    %28 = arith.subf %24, %27 : vector<2x8xf32>
    %29 = math.exp %28 : vector<2x8xf32>
    %cst_22 = arith.constant dense<0.000000e+00> : vector<2xf32>
    %30 = vector.multi_reduction <add>, %29, %cst_22 [1] : vector<2x8xf32> to vector<2xf32>
    %31 = vector.shape_cast %30 : vector<2xf32> to vector<2x1xf32>
    %32 = vector.broadcast %31 : vector<2x1xf32> to vector<2x8xf32>
    %33 = arith.divf %29, %32 : vector<2x8xf32>
    %34 = vector.shape_cast %33 : vector<2x8xf32> to vector<2x8x1xf32>
    %35 = vector.broadcast %34 : vector<2x8x1xf32> to vector<2x8x32xf32>
    %36 = arith.mulf %35, %10 : vector<2x8x32xf32>
    %cst_23 = arith.constant dense<0.000000e+00> : vector<2x32xf32>
    %37 = vector.multi_reduction <add>, %36, %cst_23 [1] : vector<2x8x32xf32> to vector<2x32xf32>
    %cst_24 = arith.constant dense<0.000000e+00> : vector<2x128xf32>
    %38 = tpu.matmul %37, %1, %cst_24 {dimension_numbers = #tpu.dot_dimension_numbers<[1], [0], [0], [1], [0, 0, 1, 1], [], []>, precision = #tpu.contract_precision<fp32>} : vector<2x32xf32>, vector<32x128xf32>, vector<2x128xf32> -> vector<2x128xf32>
    %39 = arith.addf %38, %16 : vector<2x128xf32>
    %40 = arith.addf %39, %9 : vector<2x128xf32>
    %41 = vector.broadcast %4 : vector<1x128xf32> to vector<2x128xf32>
    %42 = arith.addf %40, %41 : vector<2x128xf32>
    %43 = vector.extract_strided_slice %42 {offsets = [0, 0], sizes = [2, 32], strides = [1, 1]} : vector<2x128xf32> to vector<2x32xf32>
    %44 = arith.negf %43 : vector<2x32xf32>
    %45 = math.exp %44 : vector<2x32xf32>
    %cst_25 = arith.constant 1.000000e+00 : f32
    %46 = vector.broadcast %cst_25 : f32 to vector<2x32xf32>
    %47 = arith.addf %46, %45 : vector<2x32xf32>
    %48 = arith.divf %46, %47 : vector<2x32xf32>
    %49 = vector.extract_strided_slice %42 {offsets = [0, 32], sizes = [2, 32], strides = [1, 1]} : vector<2x128xf32> to vector<2x32xf32>
    %50 = arith.negf %49 : vector<2x32xf32>
    %51 = math.exp %50 : vector<2x32xf32>
    %cst_26 = arith.constant 1.000000e+00 : f32
    %52 = vector.broadcast %cst_26 : f32 to vector<2x32xf32>
    %53 = arith.addf %52, %51 : vector<2x32xf32>
    %54 = arith.divf %52, %53 : vector<2x32xf32>
    %55 = vector.extract_strided_slice %42 {offsets = [0, 64], sizes = [2, 32], strides = [1, 1]} : vector<2x128xf32> to vector<2x32xf32>
    %56 = math.tanh %55 : vector<2x32xf32>
    %57 = vector.extract_strided_slice %42 {offsets = [0, 96], sizes = [2, 32], strides = [1, 1]} : vector<2x128xf32> to vector<2x32xf32>
    %58 = arith.negf %57 : vector<2x32xf32>
    %59 = math.exp %58 : vector<2x32xf32>
    %cst_27 = arith.constant 1.000000e+00 : f32
    %60 = vector.broadcast %cst_27 : f32 to vector<2x32xf32>
    %61 = arith.addf %60, %59 : vector<2x32xf32>
    %62 = arith.divf %60, %61 : vector<2x32xf32>
    %63 = arith.mulf %54, %12 : vector<2x32xf32>
    %64 = arith.mulf %48, %56 : vector<2x32xf32>
    %65 = arith.addf %63, %64 : vector<2x32xf32>
    %66 = math.tanh %65 : vector<2x32xf32>
    %67 = arith.mulf %62, %66 : vector<2x32xf32>
    %68 = tpu.concatenate %24, %67, %65 in 1 : vector<2x8xf32>, vector<2x32xf32>, vector<2x32xf32> -> vector<2x72xf32>
    %cst_28 = arith.constant 0.000000e+00 : f32
    %69 = vector.broadcast %cst_28 : f32 to vector<2x56xf32>
    %70 = tpu.concatenate %68, %69 in 1 : vector<2x72xf32>, vector<2x56xf32> -> vector<2x128xf32>
    %c0_29 = arith.constant 0 : index
    %c0_30 = arith.constant 0 : index
    %71 = vector.load %arg7[%c0_29, %c0_30] : memref<2x128xf32, #tpu.memory_space<vmem>>, vector<2x128xf32>
    tpu.vector_store %arg7[%c0_29, %c0_30], %70 {strides = array<i32>} : memref<2x128xf32, #tpu.memory_space<vmem>>, vector<2x128xf32>,
    return
  }
}

</mosaic_0001>

<llo_original>
// kernel: tpu_custom_call.1
$region0: #{tpu_custom_call.1}
  #allocation0 [shape = 'u32[]', space=smem, size = 0x4, offset = 0x4, fixed_abs, tag = 'smem constant byte address 0x4 - core index']
  #allocation1 [shape = 'u32[144,128]{1,0:T(1,128)}', space=vmem, size = 0x12000, scoped, tag = 'internal scratch']
  %s0 = inlined_call_operand.hbm [shape: f32[2,8,32], index: 0, kind: input, shape index: {}]
  %s1 = inlined_call_operand.hbm [shape: f32[16,32], index: 1, kind: input, shape index: {}]
  %s2 = inlined_call_operand.vmem [shape: f32[2,32], index: 2, kind: input, shape index: {}]
  %s3 = inlined_call_operand.vmem [shape: f32[2,32], index: 3, kind: input, shape index: {}]
  %s4 = inlined_call_operand.vmem [shape: f32[2,4], index: 4, kind: input, shape index: {}]
  %s5 = inlined_call_operand.hbm [shape: f32[80,128], index: 5, kind: input, shape index: {}]
  %s6 = inlined_call_operand.hbm [shape: f32[32,256], index: 6, kind: input, shape index: {}]
  %s7 = inlined_call_operand.hbm [shape: f32[2,128], index: 7, kind: output, shape index: {}]
  %s8 = sld [smem:[#allocation0]]
  $region54: #{tpu_custom_call.1} parent=0
    _
  %s10 = ssub.s32 1, %s8
  %s11 = scalar_select 0, %s10, %s8
  $region1: #{tpu_custom_call.1} parent=0
    #allocation2 [shape = 'u8[8192]{0}', space=vmem, size = 0x2000, scoped, tag = 'input window, operand 0, single buffered']
    #allocation3 [shape = 's32[1]{0}', space=sflag, size = 0x4, scoped, tag = 'scoped memory for tpu_custom_call.1']
    #allocation4 [shape = 's32[1]{0}', space=sflag, size = 0x4, scoped, tag = 'scoped memory for tpu_custom_call.1']
    #allocation5 [shape = 'u8[8192]{0}', space=vmem, size = 0x2000, scoped, tag = 'input window, operand 1, single buffered']
    #allocation6 [shape = 's32[1]{0}', space=sflag, size = 0x4, scoped, tag = 'scoped memory for tpu_custom_call.1']
    #allocation7 [shape = 'u8[40960]{0}', space=vmem, size = 0xa000, scoped, tag = 'input window, operand 5, single buffered']
    #allocation8 [shape = 'u8[32768]{0}', space=vmem, size = 0x8000, scoped, tag = 'input window, operand 6, single buffered']
    #allocation9 [shape = 's32[1]{0}', space=sflag, size = 0x4, scoped, tag = 'scoped memory for tpu_custom_call.1']
    #allocation10 [shape = 'u8[1024]{0}', space=vmem, size = 0x400, scoped, tag = 'output window, operand 0, single buffered']
    %12 = vsyncpa [#allocation3], 0
    %13 = vsyncpa [#allocation6], 0
    %14 = vsyncpa [#allocation9], 0
    %15 = vsyncpa [#allocation4], 0
    // Predicated region
    $region2: #{tpu_custom_call.1} parent=1 // pred_check
      _
    $region3: #{tpu_custom_call.1} parent=1 // pred_check_branch
      %17 = sbr.rel (0) target = $region5
    $region4: #{tpu_custom_call.1} parent=1 // pred_region
      %s19 = ssub.s32 256, 256
      %20 = vsyncadd [#allocation3], %s19
      %s21 = sshll.u32 [#allocation2], 4
      %s22 = int_to_ptr.vmem [resolvable:$true] %s21
      %27 = dma.hbm_to_vmem [thread:$0]  %s0, 256, %s22, [#allocation3], 128, 128, 8
    $region5: #{tpu_custom_call.1} parent=1 // pred_fallthru
      _
    // Predicated region
    $region6: #{tpu_custom_call.1} parent=1 // pred_check
      _
    $region7: #{tpu_custom_call.1} parent=1 // pred_check_branch
      %29 = sbr.rel (0) target = $region9
    $region8: #{tpu_custom_call.1} parent=1 // pred_region
      %s31 = ssub.s32 256, 256
      %32 = vsyncadd [#allocation6], %s31
      %s33 = sshll.u32 [#allocation5], 4
      %s34 = int_to_ptr.vmem [resolvable:$true] %s33
      %39 = dma.hbm_to_vmem [thread:$0]  %s1, 256, %s34, [#allocation6], 128, 128, 8
    $region9: #{tpu_custom_call.1} parent=1 // pred_fallthru
      _
    // Predicated region
    $region10: #{tpu_custom_call.1} parent=1 // pred_check
      _
    $region11: #{tpu_custom_call.1} parent=1 // pred_check_branch
      %41 = sbr.rel (0) target = $region13
    $region12: #{tpu_custom_call.1} parent=1 // pred_region
      _
    $region13: #{tpu_custom_call.1} parent=1 // pred_fallthru
      _
    // Predicated region
    $region14: #{tpu_custom_call.1} parent=1 // pred_check
      _
    $region15: #{tpu_custom_call.1} parent=1 // pred_check_branch
      %43 = sbr.rel (0) target = $region17
    $region16: #{tpu_custom_call.1} parent=1 // pred_region
      _
    $region17: #{tpu_custom_call.1} parent=1 // pred_fallthru
      _
    // Predicated region
    $region18: #{tpu_custom_call.1} parent=1 // pred_check
      _
    $region19: #{tpu_custom_call.1} parent=1 // pred_check_branch
      %45 = sbr.rel (0) target = $region21
    $region20: #{tpu_custom_call.1} parent=1 // pred_region
      _
    $region21: #{tpu_custom_call.1} parent=1 // pred_fallthru
      _
    // Predicated region
    $region22: #{tpu_custom_call.1} parent=1 // pred_check
      _
    $region23: #{tpu_custom_call.1} parent=1 // pred_check_branch
      %47 = sbr.rel (0) target = $region25
    $region24: #{tpu_custom_call.1} parent=1 // pred_region
      %s49 = ssub.s32 1280, 1280
      %50 = vsyncadd [#allocation6], %s49
      %s51 = sshll.u32 [#allocation7], 4
      %s52 = int_to_ptr.vmem [resolvable:$true] %s51
      %57 = dma.hbm_to_vmem [thread:$0]  %s5, 1280, %s52, [#allocation6], 128, 128, 8
    $region25: #{tpu_custom_call.1} parent=1 // pred_fallthru
      _
    // Predicated region
    $region26: #{tpu_custom_call.1} parent=1 // pred_check
      _
    $region27: #{tpu_custom_call.1} parent=1 // pred_check_branch
      %59 = sbr.rel (0) target = $region29
    $region28: #{tpu_custom_call.1} parent=1 // pred_region
      %s61 = ssub.s32 1024, 1024
      %62 = vsyncadd [#allocation9], %s61
      %s63 = sshll.u32 [#allocation8], 4
      %s64 = int_to_ptr.vmem [resolvable:$true] %s63
      %69 = dma.hbm_to_vmem [thread:$0]  %s6, 1024, %s64, [#allocation9], 256, 256, 16
    $region29: #{tpu_custom_call.1} parent=1 // pred_fallthru
      _
    // Predicated region
    $region30: #{tpu_custom_call.1} parent=1 // pred_check
      _
    $region31: #{tpu_custom_call.1} parent=1 // pred_check_branch
      %71 = sbr.rel (0) target = $region33
    $region32: #{tpu_custom_call.1} parent=1 // pred_region
      %72 = dma.done [#allocation3], 256
    $region33: #{tpu_custom_call.1} parent=1 // pred_fallthru
      _
    // Predicated region
    $region34: #{tpu_custom_call.1} parent=1 // pred_check
      _
    $region35: #{tpu_custom_call.1} parent=1 // pred_check_branch
      %74 = sbr.rel (0) target = $region37
    $region36: #{tpu_custom_call.1} parent=1 // pred_region
      %75 = dma.done [#allocation6], 256
    $region37: #{tpu_custom_call.1} parent=1 // pred_fallthru
      _
    // Predicated region
    $region38: #{tpu_custom_call.1} parent=1 // pred_check
      _
    $region39: #{tpu_custom_call.1} parent=1 // pred_check_branch
      %77 = sbr.rel (0) target = $region41
    $region40: #{tpu_custom_call.1} parent=1 // pred_region
      %78 = dma.done [#allocation6], 1280
    $region41: #{tpu_custom_call.1} parent=1 // pred_fallthru
      _
    // Predicated region
    $region42: #{tpu_custom_call.1} parent=1 // pred_check
      _
    $region43: #{tpu_custom_call.1} parent=1 // pred_check_branch
      %80 = sbr.rel (0) target = $region45
    $region44: #{tpu_custom_call.1} parent=1 // pred_region
      %81 = dma.done [#allocation9], 1024
    $region45: #{tpu_custom_call.1} parent=1 // pred_fallthru
      _
    %v82 = vld [vmem:[#allocation7] sm:$0xff]
    %v83 = vld [vmem:[#allocation7 + $0x8] sm:$0xff]
    %v84 = vld [vmem:[#allocation7 + $0x10] sm:$0xff]
    %v85 = vld [vmem:[#allocation7 + $0x18] sm:$0xff]
    %v86 = vld [vmem:[#allocation7 + $0x20] sm:$0xff]
    %v87 = vld [vmem:[#allocation7 + $0x28] sm:$0xff]
    %v88 = vld [vmem:[#allocation7 + $0x30] sm:$0xff]
    %v89 = vld [vmem:[#allocation7 + $0x38] sm:$0xff]
    %v90 = vld [vmem:[#allocation7 + $0x40] sm:$0xf]
    %v91 = vld [vmem:[#allocation7 + $0x48] sm:$0x1]
    %v92 = vld [vmem:[#allocation7 + $0x49] sm:$0x1]
    %v93 = vld [vmem:[#allocation5] sm:$0xff]
    %v94 = vld [vmem:[#allocation5 + $0x8] sm:$0xff]
    %vm95 = vcmask 261120
    %v97 = vsel %vm95, %v93, 0
    %v100 = vsel %vm95, %v94, 0
    %102 = vmatprep.subr.mxu0 0.0
    %v103 = vand.u32 %v82, 4294901760
    %104 = vmatpush1.msra.mxu0 %v103
    %105 = vmatprep.subr.mxu0 0.0
    %v106 = vand.u32 %v83, 4294901760
    %107 = vmatpush1.msra.mxu0 %v106
    %108 = vmatprep.subr.mxu0 0.0
    %v109 = vand.u32 %v84, 4294901760
    %110 = vmatpush1.msra.mxu0 %v109
    %111 = vmatprep.subr.mxu0 0.0
    %v112 = vand.u32 %v85, 4294901760
    %113 = vmatpush1.msra.mxu0 %v112
    %114 = vmatprep.subr.mxu0 0.0
    %115 = vmatpush1.msra.mxu0 0.0
    %116 = vmatprep.subr.mxu0 0.0
    %117 = vmatpush1.msra.mxu0 0.0
    %118 = vmatprep.subr.mxu0 0.0
    %119 = vmatpush1.msra.mxu0 0.0
    %120 = vmatprep.subr.mxu0 0.0
    %121 = vmatpush1.msra.mxu0 0.0
    %122 = vmatprep.subr.mxu0 0.0
    %123 = vmatpush1.msra.mxu0 0.0
    %124 = vmatprep.subr.mxu0 0.0
    %125 = vmatpush1.msra.mxu0 0.0
    %126 = vmatprep.subr.mxu0 0.0
    %127 = vmatpush1.msra.mxu0 0.0
    %128 = vmatprep.subr.mxu0 0.0
    %129 = vmatpush1.msra.mxu0 0.0
    %130 = vmatprep.subr.mxu0 0.0
    %131 = vmatpush1.msra.mxu0 0.0
    %132 = vmatprep.subr.mxu0 0.0
    %133 = vmatpush1.msra.mxu0 0.0
    %134 = vmatprep.subr.mxu0 0.0
    %135 = vmatpush1.msra.mxu0 0.0
    %136 = vmatprep.subr.mxu0 0.0
    %137 = vmatpush1.msra.mxu0 0.0
    %138 = vmatprep.subr.mxu0 0.0
    %139 = vmatpush1.msra.mxu0 0.0
    %140 = vmatprep.subr.mxu0 0.0
    %141 = vmatpush1.msra.mxu0 0.0
    %142 = vmatprep.subr.mxu0 0.0
    %143 = vmatpush1.msra.mxu0 0.0
    %144 = vmatprep.subr.mxu0 0.0
    %145 = vmatpush1.msra.mxu0 0.0
    %146 = vmatprep.subr.mxu0 0.0
    %147 = vmatpush1.msra.mxu0 0.0
    %148 = vmatprep.subr.mxu0 0.0
    %149 = vmatpush1.msra.mxu0 0.0
    %150 = vmatprep.subr.mxu0 0.0
    %151 = vmatpush1.msra.mxu0 0.0
    %152 = vmatprep.subr.mxu0 0.0
    %153 = vmatpush1.msra.mxu0 0.0
    %154 = vmatprep.subr.mxu0 0.0
    %155 = vmatpush1.msra.mxu0 0.0
    %156 = vmatprep.subr.mxu0 0.0
    %157 = vmatpush1.msra.mxu0 0.0
    %158 = vmatprep.subr.mxu0 0.0
    %159 = vmatpush1.msra.mxu0 0.0
    %160 = vmatprep.subr.mxu0 0.0
    %161 = vmatpush1.msra.mxu0 0.0
    %162 = vmatprep.subr.mxu0 0.0
    %163 = vmatpush1.msra.mxu0 0.0
    %164 = vmatprep.subr.mxu0 0.0
    %165 = vmatpush1.msra.mxu0 0.0
    %166 = vmatprep.subr.mxu0 0.0
    %167 = vmatpush1.msra.mxu0 0.0
    %168 = vmatprep.subr.mxu0 0.0
    %169 = vmatpush1.msra.mxu0 0.0
    %170 = vmatprep.mubr.f32.mxu0 0.0
    %v171 = vand.u32 %v97, 4294901760
    %v172 = vsub.f32 %v97, %v171
    %v173 = vand.u32 %v172, 4294901760
    %v174 = vsub.f32 %v172, %v173
    %v175 = vand.u32 %v174, 4294901760
    %176 = vmatmul.mubr.f32.gmra.mrb[0].mxu0 %v175
    %v177 = vpop.f32.mrb[0].mxu0
    %v178 = vadd.f32 0.0, %v177
    %v179 = vpop.f32.mrb[0].mxu0
    %180 = vmatprep.mubr.f32.mxu0 0.0
    %v181 = vand.u32 %v100, 4294901760
    %v182 = vsub.f32 %v100, %v181
    %v183 = vand.u32 %v182, 4294901760
    %v184 = vsub.f32 %v182, %v183
    %v185 = vand.u32 %v184, 4294901760
    %186 = vmatmul.mubr.f32.gmra.mrb[0].mxu0 %v185
    %v187 = vpop.f32.mrb[0].mxu0
    %v188 = vadd.f32 0.0, %v187
    %v189 = vpop.f32.mrb[0].mxu0
    %190 = vdwg.mxu0
    %191 = vmatprep.subr.mxu0 0.0
    %v192 = vand.u32 %v82, 4294901760
    %v193 = vsub.f32 %v82, %v192
    %v194 = vand.u32 %v193, 4294901760
    %v195 = vsub.f32 %v193, %v194
    %v196 = vand.u32 %v195, 4294901760
    %197 = vmatpush1.msra.mxu0 %v196
    %198 = vmatprep.subr.mxu0 0.0
    %v199 = vand.u32 %v83, 4294901760
    %v200 = vsub.f32 %v83, %v199
    %v201 = vand.u32 %v200, 4294901760
    %v202 = vsub.f32 %v200, %v201
    %v203 = vand.u32 %v202, 4294901760
    %204 = vmatpush1.msra.mxu0 %v203
    %205 = vmatprep.subr.mxu0 0.0
    %v206 = vand.u32 %v84, 4294901760
    %v207 = vsub.f32 %v84, %v206
    %v208 = vand.u32 %v207, 4294901760
    %v209 = vsub.f32 %v207, %v208
    %v210 = vand.u32 %v209, 4294901760
    %211 = vmatpush1.msra.mxu0 %v210
    %212 = vmatprep.subr.mxu0 0.0
    %v213 = vand.u32 %v85, 4294901760
    %v214 = vsub.f32 %v85, %v213
    %v215 = vand.u32 %v214, 4294901760
    %v216 = vsub.f32 %v214, %v215
    %v217 = vand.u32 %v216, 4294901760
    %218 = vmatpush1.msra.mxu0 %v217
    %219 = vmatprep.subr.mxu0 0.0
    %220 = vmatpush1.msra.mxu0 0.0
    %221 = vmatprep.subr.mxu0 0.0
    %222 = vmatpush1.msra.mxu0 0.0
    %223 = vmatprep.subr.mxu0 0.0
    %224 = vmatpush1.msra.mxu0 0.0
    %225 = vmatprep.subr.mxu0 0.0
    %226 = vmatpush1.msra.mxu0 0.0
    %227 = vmatprep.subr.mxu0 0.0
    %228 = vmatpush1.msra.mxu0 0.0
    %229 = vmatprep.subr.mxu0 0.0
    %230 = vmatpush1.msra.mxu0 0.0
    %231 = vmatprep.subr.mxu0 0.0
    %232 = vmatpush1.msra.mxu0 0.0
    %233 = vmatprep.subr.mxu0 0.0
    %234 = vmatpush1.msra.mxu0 0.0
    %235 = vmatprep.subr.mxu0 0.0
    %236 = vmatpush1.msra.mxu0 0.0
    %237 = vmatprep.subr.mxu0 0.0
    %238 = vmatpush1.msra.mxu0 0.0
    %239 = vmatprep.subr.mxu0 0.0
    %240 = vmatpush1.msra.mxu0 0.0
    %241 = vmatprep.subr.mxu0 0.0
    %242 = vmatpush1.msra.mxu0 0.0
    %243 = vmatprep.subr.mxu0 0.0
    %244 = vmatpush1.msra.mxu0 0.0
    %245 = vmatprep.subr.mxu0 0.0
    %246 = vmatpush1.msra.mxu0 0.0
    %247 = vmatprep.subr.mxu0 0.0
    %248 = vmatpush1.msra.mxu0 0.0
    %249 = vmatprep.subr.mxu0 0.0
    %250 = vmatpush1.msra.mxu0 0.0
    %251 = vmatprep.subr.mxu0 0.0
    %252 = vmatpush1.msra.mxu0 0.0
    %253 = vmatprep.subr.mxu0 0.0
    %254 = vmatpush1.msra.mxu0 0.0
    %255 = vmatprep.subr.mxu0 0.0
    %256 = vmatpush1.msra.mxu0 0.0
    %257 = vmatprep.subr.mxu0 0.0
    %258 = vmatpush1.msra.mxu0 0.0
    %259 = vmatprep.subr.mxu0 0.0
    %260 = vmatpush1.msra.mxu0 0.0
    %261 = vmatprep.subr.mxu0 0.0
    %262 = vmatpush1.msra.mxu0 0.0
    %263 = vmatprep.subr.mxu0 0.0
    %264 = vmatpush1.msra.mxu0 0.0
    %265 = vmatprep.subr.mxu0 0.0
    %266 = vmatpush1.msra.mxu0 0.0
    %267 = vmatprep.subr.mxu0 0.0
    %268 = vmatpush1.msra.mxu0 0.0
    %269 = vmatprep.subr.mxu0 0.0
    %270 = vmatpush1.msra.mxu0 0.0
    %271 = vmatprep.subr.mxu0 0.0
    %272 = vmatpush1.msra.mxu0 0.0
    %273 = vmatprep.subr.mxu0 0.0
    %274 = vmatpush1.msra.mxu0 0.0
    %275 = vmatprep.mubr.f32.mxu0 0.0
    %v276 = vand.u32 %v97, 4294901760
    %277 = vmatmul.mubr.f32.gmra.mrb[0].mxu0 %v276
    %v278 = vpop.f32.mrb[0].mxu0
    %v279 = vadd.f32 %v178, %v278
    %v280 = vpop.f32.mrb[0].mxu0
    %281 = vmatprep.mubr.f32.mxu0 0.0
    %v282 = vand.u32 %v100, 4294901760
    %283 = vmatmul.mubr.f32.gmra.mrb[0].mxu0 %v282
    %v284 = vpop.f32.mrb[0].mxu0
    %v285 = vadd.f32 %v188, %v284
    %v286 = vpop.f32.mrb[0].mxu0
    %287 = vdwg.mxu0
    %288 = vmatprep.subr.mxu0 0.0
    %v289 = vand.u32 %v82, 4294901760
    %v290 = vsub.f32 %v82, %v289
    %291 = vmatpush1.msra.mxu0 %v290
    %292 = vmatprep.subr.mxu0 0.0
    %v293 = vand.u32 %v83, 4294901760
    %v294 = vsub.f32 %v83, %v293
    %295 = vmatpush1.msra.mxu0 %v294
    %296 = vmatprep.subr.mxu0 0.0
    %v297 = vand.u32 %v84, 4294901760
    %v298 = vsub.f32 %v84, %v297
    %299 = vmatpush1.msra.mxu0 %v298
    %300 = vmatprep.subr.mxu0 0.0
    %v301 = vand.u32 %v85, 4294901760
    %v302 = vsub.f32 %v85, %v301
    %303 = vmatpush1.msra.mxu0 %v302
    %304 = vmatprep.subr.mxu0 0.0
    %305 = vmatpush1.msra.mxu0 0.0
    %306 = vmatprep.subr.mxu0 0.0
    %307 = vmatpush1.msra.mxu0 0.0
    %308 = vmatprep.subr.mxu0 0.0
    %309 = vmatpush1.msra.mxu0 0.0
    %310 = vmatprep.subr.mxu0 0.0
    %311 = vmatpush1.msra.mxu0 0.0
    %312 = vmatprep.subr.mxu0 0.0
    %313 = vmatpush1.msra.mxu0 0.0
    %314 = vmatprep.subr.mxu0 0.0
    %315 = vmatpush1.msra.mxu0 0.0
    %316 = vmatprep.subr.mxu0 0.0
    %317 = vmatpush1.msra.mxu0 0.0
    %318 = vmatprep.subr.mxu0 0.0
    %319 = vmatpush1.msra.mxu0 0.0
    %320 = vmatprep.subr.mxu0 0.0
    %321 = vmatpush1.msra.mxu0 0.0
    %322 = vmatprep.subr.mxu0 0.0
    %323 = vmatpush1.msra.mxu0 0.0
    %324 = vmatprep.subr.mxu0 0.0
    %325 = vmatpush1.msra.mxu0 0.0
    %326 = vmatprep.subr.mxu0 0.0
    %327 = vmatpush1.msra.mxu0 0.0
    %328 = vmatprep.subr.mxu0 0.0
    %329 = vmatpush1.msra.mxu0 0.0
    %330 = vmatprep.subr.mxu0 0.0
    %331 = vmatpush1.msra.mxu0 0.0
    %332 = vmatprep.subr.mxu0 0.0
    %333 = vmatpush1.msra.mxu0 0.0
    %334 = vmatprep.subr.mxu0 0.0
    %335 = vmatpush1.msra.mxu0 0.0
    %336 = vmatprep.subr.mxu0 0.0
    %337 = vmatpush1.msra.mxu0 0.0
    %338 = vmatprep.subr.mxu0 0.0
    %339 = vmatpush1.msra.mxu0 0.0
    %340 = vmatprep.subr.mxu0 0.0
    %341 = vmatpush1.msra.mxu0 0.0
    %342 = vmatprep.subr.mxu0 0.0
    %343 = vmatpush1.msra.mxu0 0.0
    %344 = vmatprep.subr.mxu0 0.0
    %345 = vmatpush1.msra.mxu0 0.0
    %346 = vmatprep.subr.mxu0 0.0
    %347 = vmatpush1.msra.mxu0 0.0
    %348 = vmatprep.subr.mxu0 0.0
    %349 = vmatpush1.msra.mxu0 0.0
    %350 = vmatprep.subr.mxu0 0.0
    %351 = vmatpush1.msra.mxu0 0.0
    %352 = vmatprep.subr.mxu0 0.0
    %353 = vmatpush1.msra.mxu0 0.0
    %354 = vmatprep.subr.mxu0 0.0
    %355 = vmatpush1.msra.mxu0 0.0
    %356 = vmatprep.subr.mxu0 0.0
    %357 = vmatpush1.msra.mxu0 0.0
    %358 = vmatprep.subr.mxu0 0.0
    %359 = vmatpush1.msra.mxu0 0.0
    %360 = vmatprep.mubr.f32.mxu0 0.0
    %v361 = vand.u32 %v97, 4294901760
    %v362 = vsub.f32 %v97, %v361
    %363 = vmatmul.mubr.f32.gmra.mrb[0].mxu0 %v362
    %v364 = vpop.f32.mrb[0].mxu0
    %v365 = vadd.f32 %v279, %v364
    %v366 = vpop.f32.mrb[0].mxu0
    %367 = vmatprep.mubr.f32.mxu0 0.0
    %v368 = vand.u32 %v100, 4294901760
    %v369 = vsub.f32 %v100, %v368
    %370 = vmatmul.mubr.f32.gmra.mrb[0].mxu0 %v369
    %v371 = vpop.f32.mrb[0].mxu0
    %v372 = vadd.f32 %v285, %v371
    %v373 = vpop.f32.mrb[0].mxu0
    %374 = vdwg.mxu0
    %375 = vmatprep.subr.mxu0 0.0
    %v376 = vand.u32 %v82, 4294901760
    %377 = vmatpush1.msra.mxu0 %v376
    %378 = vmatprep.subr.mxu0 0.0
    %v379 = vand.u32 %v83, 4294901760
    %380 = vmatpush1.msra.mxu0 %v379
    %381 = vmatprep.subr.mxu0 0.0
    %v382 = vand.u32 %v84, 4294901760
    %383 = vmatpush1.msra.mxu0 %v382
    %384 = vmatprep.subr.mxu0 0.0
    %v385 = vand.u32 %v85, 4294901760
    %386 = vmatpush1.msra.mxu0 %v385
    %387 = vmatprep.subr.mxu0 0.0
    %388 = vmatpush1.msra.mxu0 0.0
    %389 = vmatprep.subr.mxu0 0.0
    %390 = vmatpush1.msra.mxu0 0.0
    %391 = vmatprep.subr.mxu0 0.0
    %392 = vmatpush1.msra.mxu0 0.0
    %393 = vmatprep.subr.mxu0 0.0
    %394 = vmatpush1.msra.mxu0 0.0
    %395 = vmatprep.subr.mxu0 0.0
    %396 = vmatpush1.msra.mxu0 0.0
    %397 = vmatprep.subr.mxu0 0.0
    %398 = vmatpush1.msra.mxu0 0.0
    %399 = vmatprep.subr.mxu0 0.0
    %400 = vmatpush1.msra.mxu0 0.0
    %401 = vmatprep.subr.mxu0 0.0
    %402 = vmatpush1.msra.mxu0 0.0
    %403 = vmatprep.subr.mxu0 0.0
    %404 = vmatpush1.msra.mxu0 0.0
    %405 = vmatprep.subr.mxu0 0.0
    %406 = vmatpush1.msra.mxu0 0.0
    %407 = vmatprep.subr.mxu0 0.0
    %408 = vmatpush1.msra.mxu0 0.0
    %409 = vmatprep.subr.mxu0 0.0
    %410 = vmatpush1.msra.mxu0 0.0
    %411 = vmatprep.subr.mxu0 0.0
    %412 = vmatpush1.msra.mxu0 0.0
    %413 = vmatprep.subr.mxu0 0.0
    %414 = vmatpush1.msra.mxu0 0.0
    %415 = vmatprep.subr.mxu0 0.0
    %416 = vmatpush1.msra.mxu0 0.0
    %417 = vmatprep.subr.mxu0 0.0
    %418 = vmatpush1.msra.mxu0 0.0
    %419 = vmatprep.subr.mxu0 0.0
    %420 = vmatpush1.msra.mxu0 0.0
    %421 = vmatprep.subr.mxu0 0.0
    %422 = vmatpush1.msra.mxu0 0.0
    %423 = vmatprep.subr.mxu0 0.0
    %424 = vmatpush1.msra.mxu0 0.0
    %425 = vmatprep.subr.mxu0 0.0
    %426 = vmatpush1.msra.mxu0 0.0
    %427 = vmatprep.subr.mxu0 0.0
    %428 = vmatpush1.msra.mxu0 0.0
    %429 = vmatprep.subr.mxu0 0.0
    %430 = vmatpush1.msra.mxu0 0.0
    %431 = vmatprep.subr.mxu0 0.0
    %432 = vmatpush1.msra.mxu0 0.0
    %433 = vmatprep.subr.mxu0 0.0
    %434 = vmatpush1.msra.mxu0 0.0
    %435 = vmatprep.subr.mxu0 0.0
    %436 = vmatpush1.msra.mxu0 0.0
    %437 = vmatprep.subr.mxu0 0.0
    %438 = vmatpush1.msra.mxu0 0.0
    %439 = vmatprep.subr.mxu0 0.0
    %440 = vmatpush1.msra.mxu0 0.0
    %441 = vmatprep.subr.mxu0 0.0
    %442 = vmatpush1.msra.mxu0 0.0
    %443 = vmatprep.mubr.f32.mxu0 0.0
    %v444 = vand.u32 %v97, 4294901760
    %v445 = vsub.f32 %v97, %v444
    %v446 = vand.u32 %v445, 4294901760
    %447 = vmatmul.mubr.f32.gmra.mrb[0].mxu0 %v446
    %v448 = vpop.f32.mrb[0].mxu0
    %v449 = vadd.f32 %v365, %v448
    %v450 = vpop.f32.mrb[0].mxu0
    %451 = vmatprep.mubr.f32.mxu0 0.0
    %v452 = vand.u32 %v100, 4294901760
    %v453 = vsub.f32 %v100, %v452
    %v454 = vand.u32 %v453, 4294901760
    %455 = vmatmul.mubr.f32.gmra.mrb[0].mxu0 %v454
    %v456 = vpop.f32.mrb[0].mxu0
    %v457 = vadd.f32 %v372, %v456
    %v458 = vpop.f32.mrb[0].mxu0
    %459 = vdwg.mxu0
    %460 = vmatprep.subr.mxu0 0.0
    %v461 = vand.u32 %v82, 4294901760
    %v462 = vsub.f32 %v82, %v461
    %v463 = vand.u32 %v462, 4294901760
    %464 = vmatpush1.msra.mxu0 %v463
    %465 = vmatprep.subr.mxu0 0.0
    %v466 = vand.u32 %v83, 4294901760
    %v467 = vsub.f32 %v83, %v466
    %v468 = vand.u32 %v467, 4294901760
    %469 = vmatpush1.msra.mxu0 %v468
    %470 = vmatprep.subr.mxu0 0.0
    %v471 = vand.u32 %v84, 4294901760
    %v472 = vsub.f32 %v84, %v471
    %v473 = vand.u32 %v472, 4294901760
    %474 = vmatpush1.msra.mxu0 %v473
    %475 = vmatprep.subr.mxu0 0.0
    %v476 = vand.u32 %v85, 4294901760
    %v477 = vsub.f32 %v85, %v476
    %v478 = vand.u32 %v477, 4294901760
    %479 = vmatpush1.msra.mxu0 %v478
    %480 = vmatprep.subr.mxu0 0.0
    %481 = vmatpush1.msra.mxu0 0.0
    %482 = vmatprep.subr.mxu0 0.0
    %483 = vmatpush1.msra.mxu0 0.0
    %484 = vmatprep.subr.mxu0 0.0
    %485 = vmatpush1.msra.mxu0 0.0
    %486 = vmatprep.subr.mxu0 0.0
    %487 = vmatpush1.msra.mxu0 0.0
    %488 = vmatprep.subr.mxu0 0.0
    %489 = vmatpush1.msra.mxu0 0.0
    %490 = vmatprep.subr.mxu0 0.0
    %491 = vmatpush1.msra.mxu0 0.0
    %492 = vmatprep.subr.mxu0 0.0
    %493 = vmatpush1.msra.mxu0 0.0
    %494 = vmatprep.subr.mxu0 0.0
    %495 = vmatpush1.msra.mxu0 0.0
    %496 = vmatprep.subr.mxu0 0.0
    %497 = vmatpush1.msra.mxu0 0.0
    %498 = vmatprep.subr.mxu0 0.0
    %499 = vmatpush1.msra.mxu0 0.0
    %500 = vmatprep.subr.mxu0 0.0
    %501 = vmatpush1.msra.mxu0 0.0
    %502 = vmatprep.subr.mxu0 0.0
    %503 = vmatpush1.msra.mxu0 0.0
    %504 = vmatprep.subr.mxu0 0.0
    %505 = vmatpush1.msra.mxu0 0.0
    %506 = vmatprep.subr.mxu0 0.0
    %507 = vmatpush1.msra.mxu0 0.0
    %508 = vmatprep.subr.mxu0 0.0
    %509 = vmatpush1.msra.mxu0 0.0
    %510 = vmatprep.subr.mxu0 0.0
    %511 = vmatpush1.msra.mxu0 0.0
    %512 = vmatprep.subr.mxu0 0.0
    %513 = vmatpush1.msra.mxu0 0.0
    %514 = vmatprep.subr.mxu0 0.0
    %515 = vmatpush1.msra.mxu0 0.0
    %516 = vmatprep.subr.mxu0 0.0
    %517 = vmatpush1.msra.mxu0 0.0
    %518 = vmatprep.subr.mxu0 0.0
    %519 = vmatpush1.msra.mxu0 0.0
    %520 = vmatprep.subr.mxu0 0.0
    %521 = vmatpush1.msra.mxu0 0.0
    %522 = vmatprep.subr.mxu0 0.0
    %523 = vmatpush1.msra.mxu0 0.0
    %524 = vmatprep.subr.mxu0 0.0
    %525 = vmatpush1.msra.mxu0 0.0
    %526 = vmatprep.subr.mxu0 0.0
    %527 = vmatpush1.msra.mxu0 0.0
    %528 = vmatprep.subr.mxu0 0.0
    %529 = vmatpush1.msra.mxu0 0.0
    %530 = vmatprep.subr.mxu0 0.0
    %531 = vmatpush1.msra.mxu0 0.0
    %532 = vmatprep.subr.mxu0 0.0
    %533 = vmatpush1.msra.mxu0 0.0
    %534 = vmatprep.subr.mxu0 0.0
    %535 = vmatpush1.msra.mxu0 0.0
    %536 = vmatprep.mubr.f32.mxu0 0.0
    %v537 = vand.u32 %v97, 4294901760
    %538 = vmatmul.mubr.f32.gmra.mrb[0].mxu0 %v537
    %v539 = vpop.f32.mrb[0].mxu0
    %v540 = vadd.f32 %v449, %v539
    %v541 = vpop.f32.mrb[0].mxu0
    %542 = vmatprep.mubr.f32.mxu0 0.0
    %v543 = vand.u32 %v100, 4294901760
    %544 = vmatmul.mubr.f32.gmra.mrb[0].mxu0 %v543
    %v545 = vpop.f32.mrb[0].mxu0
    %v546 = vadd.f32 %v457, %v545
    %v547 = vpop.f32.mrb[0].mxu0
    %548 = vdwg.mxu0
    %549 = vmatprep.subr.mxu0 0.0
    %v550 = vand.u32 %v82, 4294901760
    %551 = vmatpush1.msra.mxu0 %v550
    %552 = vmatprep.subr.mxu0 0.0
    %v553 = vand.u32 %v83, 4294901760
    %554 = vmatpush1.msra.mxu0 %v553
    %555 = vmatprep.subr.mxu0 0.0
    %v556 = vand.u32 %v84, 4294901760
    %557 = vmatpush1.msra.mxu0 %v556
    %558 = vmatprep.subr.mxu0 0.0
    %v559 = vand.u32 %v85, 4294901760
    %560 = vmatpush1.msra.mxu0 %v559
    %561 = vmatprep.subr.mxu0 0.0
    %562 = vmatpush1.msra.mxu0 0.0
    %563 = vmatprep.subr.mxu0 0.0
    %564 = vmatpush1.msra.mxu0 0.0
    %565 = vmatprep.subr.mxu0 0.0
    %566 = vmatpush1.msra.mxu0 0.0
    %567 = vmatprep.subr.mxu0 0.0
    %568 = vmatpush1.msra.mxu0 0.0
    %569 = vmatprep.subr.mxu0 0.0
    %570 = vmatpush1.msra.mxu0 0.0
    %571 = vmatprep.subr.mxu0 0.0
    %572 = vmatpush1.msra.mxu0 0.0
    %573 = vmatprep.subr.mxu0 0.0
    %574 = vmatpush1.msra.mxu0 0.0
    %575 = vmatprep.subr.mxu0 0.0
    %576 = vmatpush1.msra.mxu0 0.0
    %577 = vmatprep.subr.mxu0 0.0
    %578 = vmatpush1.msra.mxu0 0.0
    %579 = vmatprep.subr.mxu0 0.0
    %580 = vmatpush1.msra.mxu0 0.0
    %581 = vmatprep.subr.mxu0 0.0
    %582 = vmatpush1.msra.mxu0 0.0
    %583 = vmatprep.subr.mxu0 0.0
    %584 = vmatpush1.msra.mxu0 0.0
    %585 = vmatprep.subr.mxu0 0.0
    %586 = vmatpush1.msra.mxu0 0.0
    %587 = vmatprep.subr.mxu0 0.0
    %588 = vmatpush1.msra.mxu0 0.0
    %589 = vmatprep.subr.mxu0 0.0
    %590 = vmatpush1.msra.mxu0 0.0
    %591 = vmatprep.subr.mxu0 0.0
    %592 = vmatpush1.msra.mxu0 0.0
    %593 = vmatprep.subr.mxu0 0.0
    %594 = vmatpush1.msra.mxu0 0.0
    %595 = vmatprep.subr.mxu0 0.0
    %596 = vmatpush1.msra.mxu0 0.0
    %597 = vmatprep.subr.mxu0 0.0
    %598 = vmatpush1.msra.mxu0 0.0
    %599 = vmatprep.subr.mxu0 0.0
    %600 = vmatpush1.msra.mxu0 0.0
    %601 = vmatprep.subr.mxu0 0.0
    %602 = vmatpush1.msra.mxu0 0.0
    %603 = vmatprep.subr.mxu0 0.0
    %604 = vmatpush1.msra.mxu0 0.0
    %605 = vmatprep.subr.mxu0 0.0
    %606 = vmatpush1.msra.mxu0 0.0
    %607 = vmatprep.subr.mxu0 0.0
    %608 = vmatpush1.msra.mxu0 0.0
    %609 = vmatprep.subr.mxu0 0.0
    %610 = vmatpush1.msra.mxu0 0.0
    %611 = vmatprep.subr.mxu0 0.0
    %612 = vmatpush1.msra.mxu0 0.0
    %613 = vmatprep.subr.mxu0 0.0
    %614 = vmatpush1.msra.mxu0 0.0
    %615 = vmatprep.subr.mxu0 0.0
    %616 = vmatpush1.msra.mxu0 0.0
    %617 = vmatprep.mubr.f32.mxu0 0.0
    %v618 = vand.u32 %v97, 4294901760
    %619 = vmatmul.mubr.f32.gmra.mrb[0].mxu0 %v618
    %v620 = vpop.f32.mrb[0].mxu0
    %v621 = vadd.f32 %v540, %v620
    %v622 = vpop.f32.mrb[0].mxu0
    %623 = vmatprep.mubr.f32.mxu0 0.0
    %v624 = vand.u32 %v100, 4294901760
    %625 = vmatmul.mubr.f32.gmra.mrb[0].mxu0 %v624
    %v626 = vpop.f32.mrb[0].mxu0
    %v627 = vadd.f32 %v546, %v626
    %v628 = vpop.f32.mrb[0].mxu0
    %629 = vdwg.mxu0
    %v630 = vld [vmem:[%s4] sm:$0x3]
    %vm631 = vcmask 31744
    %v633 = vsel %vm631, %v630, 0
    %vm635 = vcmask 1043456
    %v637 = vsel %vm635, %v90, 0
    %639 = vmatprep.subr.mxu0 0.0
    %v640 = vand.u32 %v637, 4294901760
    %641 = vmatpush1.msra.mxu0 %v640
    %642 = vmatprep.subr.mxu0 0.0
    %643 = vmatpush1.msra.mxu0 0.0
    %644 = vmatprep.subr.mxu0 0.0
    %645 = vmatpush1.msra.mxu0 0.0
    %646 = vmatprep.subr.mxu0 0.0
    %647 = vmatpush1.msra.mxu0 0.0
    %648 = vmatprep.subr.mxu0 0.0
    %649 = vmatpush1.msra.mxu0 0.0
    %650 = vmatprep.subr.mxu0 0.0
    %651 = vmatpush1.msra.mxu0 0.0
    %652 = vmatprep.subr.mxu0 0.0
    %653 = vmatpush1.msra.mxu0 0.0
    %654 = vmatprep.subr.mxu0 0.0
    %655 = vmatpush1.msra.mxu0 0.0
    %656 = vmatprep.subr.mxu0 0.0
    %657 = vmatpush1.msra.mxu0 0.0
    %658 = vmatprep.subr.mxu0 0.0
    %659 = vmatpush1.msra.mxu0 0.0
    %660 = vmatprep.subr.mxu0 0.0
    %661 = vmatpush1.msra.mxu0 0.0
    %662 = vmatprep.subr.mxu0 0.0
    %663 = vmatpush1.msra.mxu0 0.0
    %664 = vmatprep.subr.mxu0 0.0
    %665 = vmatpush1.msra.mxu0 0.0
    %666 = vmatprep.subr.mxu0 0.0
    %667 = vmatpush1.msra.mxu0 0.0
    %668 = vmatprep.subr.mxu0 0.0
    %669 = vmatpush1.msra.mxu0 0.0
    %670 = vmatprep.subr.mxu0 0.0
    %671 = vmatpush1.msra.mxu0 0.0
    %672 = vmatprep.subr.mxu0 0.0
    %673 = vmatpush1.msra.mxu0 0.0
    %674 = vmatprep.subr.mxu0 0.0
    %675 = vmatpush1.msra.mxu0 0.0
    %676 = vmatprep.subr.mxu0 0.0
    %677 = vmatpush1.msra.mxu0 0.0
    %678 = vmatprep.subr.mxu0 0.0
    %679 = vmatpush1.msra.mxu0 0.0
    %680 = vmatprep.subr.mxu0 0.0
    %681 = vmatpush1.msra.mxu0 0.0
    %682 = vmatprep.subr.mxu0 0.0
    %683 = vmatpush1.msra.mxu0 0.0
    %684 = vmatprep.subr.mxu0 0.0
    %685 = vmatpush1.msra.mxu0 0.0
    %686 = vmatprep.subr.mxu0 0.0
    %687 = vmatpush1.msra.mxu0 0.0
    %688 = vmatprep.subr.mxu0 0.0
    %689 = vmatpush1.msra.mxu0 0.0
    %690 = vmatprep.subr.mxu0 0.0
    %691 = vmatpush1.msra.mxu0 0.0
    %692 = vmatprep.subr.mxu0 0.0
    %693 = vmatpush1.msra.mxu0 0.0
    %694 = vmatprep.subr.mxu0 0.0
    %695 = vmatpush1.msra.mxu0 0.0
    %696 = vmatprep.subr.mxu0 0.0
    %697 = vmatpush1.msra.mxu0 0.0
    %698 = vmatprep.subr.mxu0 0.0
    %699 = vmatpush1.msra.mxu0 0.0
    %700 = vmatprep.subr.mxu0 0.0
    %701 = vmatpush1.msra.mxu0 0.0
    %702 = vmatprep.subr.mxu0 0.0
    %703 = vmatpush1.msra.mxu0 0.0
    %704 = vmatprep.mubr.f32.mxu0 0.0
    %v705 = vand.u32 %v633, 4294901760
    %v706 = vsub.f32 %v633, %v705
    %v707 = vand.u32 %v706, 4294901760
    %v708 = vsub.f32 %v706, %v707
    %v709 = vand.u32 %v708, 4294901760
    %710 = vmatmul.mubr.f32.gmra.mrb[0].mxu0 %v709
    %v711 = vpop.f32.mrb[0].mxu0
    %v712 = vadd.f32 0.0, %v711
    %v713 = vpop.f32.mrb[0].mxu0
    %714 = vdwg.mxu0
    %715 = vmatprep.subr.mxu0 0.0
    %v716 = vand.u32 %v637, 4294901760
    %v717 = vsub.f32 %v637, %v716
    %v718 = vand.u32 %v717, 4294901760
    %v719 = vsub.f32 %v717, %v718
    %v720 = vand.u32 %v719, 4294901760
    %721 = vmatpush1.msra.mxu0 %v720
    %722 = vmatprep.subr.mxu0 0.0
    %723 = vmatpush1.msra.mxu0 0.0
    %724 = vmatprep.subr.mxu0 0.0
    %725 = vmatpush1.msra.mxu0 0.0
    %726 = vmatprep.subr.mxu0 0.0
    %727 = vmatpush1.msra.mxu0 0.0
    %728 = vmatprep.subr.mxu0 0.0
    %729 = vmatpush1.msra.mxu0 0.0
    %730 = vmatprep.subr.mxu0 0.0
    %731 = vmatpush1.msra.mxu0 0.0
    %732 = vmatprep.subr.mxu0 0.0
    %733 = vmatpush1.msra.mxu0 0.0
    %734 = vmatprep.subr.mxu0 0.0
    %735 = vmatpush1.msra.mxu0 0.0
    %736 = vmatprep.subr.mxu0 0.0
    %737 = vmatpush1.msra.mxu0 0.0
    %738 = vmatprep.subr.mxu0 0.0
    %739 = vmatpush1.msra.mxu0 0.0
    %740 = vmatprep.subr.mxu0 0.0
    %741 = vmatpush1.msra.mxu0 0.0
    %742 = vmatprep.subr.mxu0 0.0
    %743 = vmatpush1.msra.mxu0 0.0
    %744 = vmatprep.subr.mxu0 0.0
    %745 = vmatpush1.msra.mxu0 0.0
    %746 = vmatprep.subr.mxu0 0.0
    %747 = vmatpush1.msra.mxu0 0.0
    %748 = vmatprep.subr.mxu0 0.0
    %749 = vmatpush1.msra.mxu0 0.0
    %750 = vmatprep.subr.mxu0 0.0
    %751 = vmatpush1.msra.mxu0 0.0
    %752 = vmatprep.subr.mxu0 0.0
    %753 = vmatpush1.msra.mxu0 0.0
    %754 = vmatprep.subr.mxu0 0.0
    %755 = vmatpush1.msra.mxu0 0.0
    %756 = vmatprep.subr.mxu0 0.0
    %757 = vmatpush1.msra.mxu0 0.0
    %758 = vmatprep.subr.mxu0 0.0
    %759 = vmatpush1.msra.mxu0 0.0
    %760 = vmatprep.subr.mxu0 0.0
    %761 = vmatpush1.msra.mxu0 0.0
    %762 = vmatprep.subr.mxu0 0.0
    %763 = vmatpush1.msra.mxu0 0.0
    %764 = vmatprep.subr.mxu0 0.0
    %765 = vmatpush1.msra.mxu0 0.0
    %766 = vmatprep.subr.mxu0 0.0
    %767 = vmatpush1.msra.mxu0 0.0
    %768 = vmatprep.subr.mxu0 0.0
    %769 = vmatpush1.msra.mxu0 0.0
    %770 = vmatprep.subr.mxu0 0.0
    %771 = vmatpush1.msra.mxu0 0.0
    %772 = vmatprep.subr.mxu0 0.0
    %773 = vmatpush1.msra.mxu0 0.0
    %774 = vmatprep.subr.mxu0 0.0
    %775 = vmatpush1.msra.mxu0 0.0
    %776 = vmatprep.subr.mxu0 0.0
    %777 = vmatpush1.msra.mxu0 0.0
    %778 = vmatprep.subr.mxu0 0.0
    %779 = vmatpush1.msra.mxu0 0.0
    %780 = vmatprep.subr.mxu0 0.0
    %781 = vmatpush1.msra.mxu0 0.0
    %782 = vmatprep.subr.mxu0 0.0
    %783 = vmatpush1.msra.mxu0 0.0
    %784 = vmatprep.mubr.f32.mxu0 0.0
    %v785 = vand.u32 %v633, 4294901760
    %786 = vmatmul.mubr.f32.gmra.mrb[0].mxu0 %v785
    %v787 = vpop.f32.mrb[0].mxu0
    %v788 = vadd.f32 %v712, %v787
    %v789 = vpop.f32.mrb[0].mxu0
    %790 = vdwg.mxu0
    %791 = vmatprep.subr.mxu0 0.0
    %v792 = vand.u32 %v637, 4294901760
    %v793 = vsub.f32 %v637, %v792
    %794 = vmatpush1.msra.mxu0 %v793
    %795 = vmatprep.subr.mxu0 0.0
    %796 = vmatpush1.msra.mxu0 0.0
    %797 = vmatprep.subr.mxu0 0.0
    %798 = vmatpush1.msra.mxu0 0.0
    %799 = vmatprep.subr.mxu0 0.0
    %800 = vmatpush1.msra.mxu0 0.0
    %801 = vmatprep.subr.mxu0 0.0
    %802 = vmatpush1.msra.mxu0 0.0
    %803 = vmatprep.subr.mxu0 0.0
    %804 = vmatpush1.msra.mxu0 0.0
    %805 = vmatprep.subr.mxu0 0.0
    %806 = vmatpush1.msra.mxu0 0.0
    %807 = vmatprep.subr.mxu0 0.0
    %808 = vmatpush1.msra.mxu0 0.0
    %809 = vmatprep.subr.mxu0 0.0
    %810 = vmatpush1.msra.mxu0 0.0
    %811 = vmatprep.subr.mxu0 0.0
    %812 = vmatpush1.msra.mxu0 0.0
    %813 = vmatprep.subr.mxu0 0.0
    %814 = vmatpush1.msra.mxu0 0.0
    %815 = vmatprep.subr.mxu0 0.0
    %816 = vmatpush1.msra.mxu0 0.0
    %817 = vmatprep.subr.mxu0 0.0
    %818 = vmatpush1.msra.mxu0 0.0
    %819 = vmatprep.subr.mxu0 0.0
    %820 = vmatpush1.msra.mxu0 0.0
    %821 = vmatprep.subr.mxu0 0.0
    %822 = vmatpush1.msra.mxu0 0.0
    %823 = vmatprep.subr.mxu0 0.0
    %824 = vmatpush1.msra.mxu0 0.0
    %825 = vmatprep.subr.mxu0 0.0
    %826 = vmatpush1.msra.mxu0 0.0
    %827 = vmatprep.subr.mxu0 0.0
    %828 = vmatpush1.msra.mxu0 0.0
    %829 = vmatprep.subr.mxu0 0.0
    %830 = vmatpush1.msra.mxu0 0.0
    %831 = vmatprep.subr.mxu0 0.0
    %832 = vmatpush1.msra.mxu0 0.0
    %833 = vmatprep.subr.mxu0 0.0
    %834 = vmatpush1.msra.mxu0 0.0
    %835 = vmatprep.subr.mxu0 0.0
    %836 = vmatpush1.msra.mxu0 0.0
    %837 = vmatprep.subr.mxu0 0.0
    %838 = vmatpush1.msra.mxu0 0.0
    %839 = vmatprep.subr.mxu0 0.0
    %840 = vmatpush1.msra.mxu0 0.0
    %841 = vmatprep.subr.mxu0 0.0
    %842 = vmatpush1.msra.mxu0 0.0
    %843 = vmatprep.subr.mxu0 0.0
    %844 = vmatpush1.msra.mxu0 0.0
    %845 = vmatprep.subr.mxu0 0.0
    %846 = vmatpush1.msra.mxu0 0.0
    %847 = vmatprep.subr.mxu0 0.0
    %848 = vmatpush1.msra.mxu0 0.0
    %849 = vmatprep.subr.mxu0 0.0
    %850 = vmatpush1.msra.mxu0 0.0
    %851 = vmatprep.subr.mxu0 0.0
    %852 = vmatpush1.msra.mxu0 0.0
    %853 = vmatprep.subr.mxu0 0.0
    %854 = vmatpush1.msra.mxu0 0.0
    %855 = vmatprep.subr.mxu0 0.0
    %856 = vmatpush1.msra.mxu0 0.0
    %857 = vmatprep.mubr.f32.mxu0 0.0
    %v858 = vand.u32 %v633, 4294901760
    %v859 = vsub.f32 %v633, %v858
    %860 = vmatmul.mubr.f32.gmra.mrb[0].mxu0 %v859
    %v861 = vpop.f32.mrb[0].mxu0
    %v862 = vadd.f32 %v788, %v861
    %v863 = vpop.f32.mrb[0].mxu0
    %864 = vdwg.mxu0
    %865 = vmatprep.subr.mxu0 0.0
    %v866 = vand.u32 %v637, 4294901760
    %867 = vmatpush1.msra.mxu0 %v866
    %868 = vmatprep.subr.mxu0 0.0
    %869 = vmatpush1.msra.mxu0 0.0
    %870 = vmatprep.subr.mxu0 0.0
    %871 = vmatpush1.msra.mxu0 0.0
    %872 = vmatprep.subr.mxu0 0.0
    %873 = vmatpush1.msra.mxu0 0.0
    %874 = vmatprep.subr.mxu0 0.0
    %875 = vmatpush1.msra.mxu0 0.0
    %876 = vmatprep.subr.mxu0 0.0
    %877 = vmatpush1.msra.mxu0 0.0
    %878 = vmatprep.subr.mxu0 0.0
    %879 = vmatpush1.msra.mxu0 0.0
    %880 = vmatprep.subr.mxu0 0.0
    %881 = vmatpush1.msra.mxu0 0.0
    %882 = vmatprep.subr.mxu0 0.0
    %883 = vmatpush1.msra.mxu0 0.0
    %884 = vmatprep.subr.mxu0 0.0
    %885 = vmatpush1.msra.mxu0 0.0
    %886 = vmatprep.subr.mxu0 0.0
    %887 = vmatpush1.msra.mxu0 0.0
    %888 = vmatprep.subr.mxu0 0.0
    %889 = vmatpush1.msra.mxu0 0.0
    %890 = vmatprep.subr.mxu0 0.0
    %891 = vmatpush1.msra.mxu0 0.0
    %892 = vmatprep.subr.mxu0 0.0
    %893 = vmatpush1.msra.mxu0 0.0
    %894 = vmatprep.subr.mxu0 0.0
    %895 = vmatpush1.msra.mxu0 0.0
    %896 = vmatprep.subr.mxu0 0.0
    %897 = vmatpush1.msra.mxu0 0.0
    %898 = vmatprep.subr.mxu0 0.0
    %899 = vmatpush1.msra.mxu0 0.0
    %900 = vmatprep.subr.mxu0 0.0
    %901 = vmatpush1.msra.mxu0 0.0
    %902 = vmatprep.subr.mxu0 0.0
    %903 = vmatpush1.msra.mxu0 0.0
    %904 = vmatprep.subr.mxu0 0.0
    %905 = vmatpush1.msra.mxu0 0.0
    %906 = vmatprep.subr.mxu0 0.0
    %907 = vmatpush1.msra.mxu0 0.0
    %908 = vmatprep.subr.mxu0 0.0
    %909 = vmatpush1.msra.mxu0 0.0
    %910 = vmatprep.subr.mxu0 0.0
    %911 = vmatpush1.msra.mxu0 0.0
    %912 = vmatprep.subr.mxu0 0.0
    %913 = vmatpush1.msra.mxu0 0.0
    %914 = vmatprep.subr.mxu0 0.0
    %915 = vmatpush1.msra.mxu0 0.0
    %916 = vmatprep.subr.mxu0 0.0
    %917 = vmatpush1.msra.mxu0 0.0
    %918 = vmatprep.subr.mxu0 0.0
    %919 = vmatpush1.msra.mxu0 0.0
    %920 = vmatprep.subr.mxu0 0.0
    %921 = vmatpush1.msra.mxu0 0.0
    %922 = vmatprep.subr.mxu0 0.0
    %923 = vmatpush1.msra.mxu0 0.0
    %924 = vmatprep.subr.mxu0 0.0
    %925 = vmatpush1.msra.mxu0 0.0
    %926 = vmatprep.subr.mxu0 0.0
    %927 = vmatpush1.msra.mxu0 0.0
    %928 = vmatprep.subr.mxu0 0.0
    %929 = vmatpush1.msra.mxu0 0.0
    %930 = vmatprep.mubr.f32.mxu0 0.0
    %v931 = vand.u32 %v633, 4294901760
    %v932 = vsub.f32 %v633, %v931
    %v933 = vand.u32 %v932, 4294901760
    %934 = vmatmul.mubr.f32.gmra.mrb[0].mxu0 %v933
    %v935 = vpop.f32.mrb[0].mxu0
    %v936 = vadd.f32 %v862, %v935
    %v937 = vpop.f32.mrb[0].mxu0
    %938 = vdwg.mxu0
    %939 = vmatprep.subr.mxu0 0.0
    %v940 = vand.u32 %v637, 4294901760
    %v941 = vsub.f32 %v637, %v940
    %v942 = vand.u32 %v941, 4294901760
    %943 = vmatpush1.msra.mxu0 %v942
    %944 = vmatprep.subr.mxu0 0.0
    %945 = vmatpush1.msra.mxu0 0.0
    %946 = vmatprep.subr.mxu0 0.0
    %947 = vmatpush1.msra.mxu0 0.0
    %948 = vmatprep.subr.mxu0 0.0
    %949 = vmatpush1.msra.mxu0 0.0
    %950 = vmatprep.subr.mxu0 0.0
    %951 = vmatpush1.msra.mxu0 0.0
    %952 = vmatprep.subr.mxu0 0.0
    %953 = vmatpush1.msra.mxu0 0.0
    %954 = vmatprep.subr.mxu0 0.0
    %955 = vmatpush1.msra.mxu0 0.0
    %956 = vmatprep.subr.mxu0 0.0
    %957 = vmatpush1.msra.mxu0 0.0
    %958 = vmatprep.subr.mxu0 0.0
    %959 = vmatpush1.msra.mxu0 0.0
    %960 = vmatprep.subr.mxu0 0.0
    %961 = vmatpush1.msra.mxu0 0.0
    %962 = vmatprep.subr.mxu0 0.0
    %963 = vmatpush1.msra.mxu0 0.0
    %964 = vmatprep.subr.mxu0 0.0
    %965 = vmatpush1.msra.mxu0 0.0
    %966 = vmatprep.subr.mxu0 0.0
    %967 = vmatpush1.msra.mxu0 0.0
    %968 = vmatprep.subr.mxu0 0.0
    %969 = vmatpush1.msra.mxu0 0.0
    %970 = vmatprep.subr.mxu0 0.0
    %971 = vmatpush1.msra.mxu0 0.0
    %972 = vmatprep.subr.mxu0 0.0
    %973 = vmatpush1.msra.mxu0 0.0
    %974 = vmatprep.subr.mxu0 0.0
    %975 = vmatpush1.msra.mxu0 0.0
    %976 = vmatprep.subr.mxu0 0.0
    %977 = vmatpush1.msra.mxu0 0.0
    %978 = vmatprep.subr.mxu0 0.0
    %979 = vmatpush1.msra.mxu0 0.0
    %980 = vmatprep.subr.mxu0 0.0
    %981 = vmatpush1.msra.mxu0 0.0
    %982 = vmatprep.subr.mxu0 0.0
    %983 = vmatpush1.msra.mxu0 0.0
    %984 = vmatprep.subr.mxu0 0.0
    %985 = vmatpush1.msra.mxu0 0.0
    %986 = vmatprep.subr.mxu0 0.0
    %987 = vmatpush1.msra.mxu0 0.0
    %988 = vmatprep.subr.mxu0 0.0
    %989 = vmatpush1.msra.mxu0 0.0
    %990 = vmatprep.subr.mxu0 0.0
    %991 = vmatpush1.msra.mxu0 0.0
    %992 = vmatprep.subr.mxu0 0.0
    %993 = vmatpush1.msra.mxu0 0.0
    %994 = vmatprep.subr.mxu0 0.0
    %995 = vmatpush1.msra.mxu0 0.0
    %996 = vmatprep.subr.mxu0 0.0
    %997 = vmatpush1.msra.mxu0 0.0
    %998 = vmatprep.subr.mxu0 0.0
    %999 = vmatpush1.msra.mxu0 0.0
    %1000 = vmatprep.subr.mxu0 0.0
    %1001 = vmatpush1.msra.mxu0 0.0
    %1002 = vmatprep.subr.mxu0 0.0
    %1003 = vmatpush1.msra.mxu0 0.0
    %1004 = vmatprep.subr.mxu0 0.0
    %1005 = vmatpush1.msra.mxu0 0.0
    %1006 = vmatprep.mubr.f32.mxu0 0.0
    %v1007 = vand.u32 %v633, 4294901760
    %1008 = vmatmul.mubr.f32.gmra.mrb[0].mxu0 %v1007
    %v1009 = vpop.f32.mrb[0].mxu0
    %v1010 = vadd.f32 %v936, %v1009
    %v1011 = vpop.f32.mrb[0].mxu0
    %1012 = vdwg.mxu0
    %1013 = vmatprep.subr.mxu0 0.0
    %v1014 = vand.u32 %v637, 4294901760
    %1015 = vmatpush1.msra.mxu0 %v1014
    %1016 = vmatprep.subr.mxu0 0.0
    %1017 = vmatpush1.msra.mxu0 0.0
    %1018 = vmatprep.subr.mxu0 0.0
    %1019 = vmatpush1.msra.mxu0 0.0
    %1020 = vmatprep.subr.mxu0 0.0
    %1021 = vmatpush1.msra.mxu0 0.0
    %1022 = vmatprep.subr.mxu0 0.0
    %1023 = vmatpush1.msra.mxu0 0.0
    %1024 = vmatprep.subr.mxu0 0.0
    %1025 = vmatpush1.msra.mxu0 0.0
    %1026 = vmatprep.subr.mxu0 0.0
    %1027 = vmatpush1.msra.mxu0 0.0
    %1028 = vmatprep.subr.mxu0 0.0
    %1029 = vmatpush1.msra.mxu0 0.0
    %1030 = vmatprep.subr.mxu0 0.0
    %1031 = vmatpush1.msra.mxu0 0.0
    %1032 = vmatprep.subr.mxu0 0.0
    %1033 = vmatpush1.msra.mxu0 0.0
    %1034 = vmatprep.subr.mxu0 0.0
    %1035 = vmatpush1.msra.mxu0 0.0
    %1036 = vmatprep.subr.mxu0 0.0
    %1037 = vmatpush1.msra.mxu0 0.0
    %1038 = vmatprep.subr.mxu0 0.0
    %1039 = vmatpush1.msra.mxu0 0.0
    %1040 = vmatprep.subr.mxu0 0.0
    %1041 = vmatpush1.msra.mxu0 0.0
    %1042 = vmatprep.subr.mxu0 0.0
    %1043 = vmatpush1.msra.mxu0 0.0
    %1044 = vmatprep.subr.mxu0 0.0
    %1045 = vmatpush1.msra.mxu0 0.0
    %1046 = vmatprep.subr.mxu0 0.0
    %1047 = vmatpush1.msra.mxu0 0.0
    %1048 = vmatprep.subr.mxu0 0.0
    %1049 = vmatpush1.msra.mxu0 0.0
    %1050 = vmatprep.subr.mxu0 0.0
    %1051 = vmatpush1.msra.mxu0 0.0
    %1052 = vmatprep.subr.mxu0 0.0
    %1053 = vmatpush1.msra.mxu0 0.0
    %1054 = vmatprep.subr.mxu0 0.0
    %1055 = vmatpush1.msra.mxu0 0.0
    %1056 = vmatprep.subr.mxu0 0.0
    %1057 = vmatpush1.msra.mxu0 0.0
    %1058 = vmatprep.subr.mxu0 0.0
    %1059 = vmatpush1.msra.mxu0 0.0
    %1060 = vmatprep.subr.mxu0 0.0
    %1061 = vmatpush1.msra.mxu0 0.0
    %1062 = vmatprep.subr.mxu0 0.0
    %1063 = vmatpush1.msra.mxu0 0.0
    %1064 = vmatprep.subr.mxu0 0.0
    %1065 = vmatpush1.msra.mxu0 0.0
    %1066 = vmatprep.subr.mxu0 0.0
    %1067 = vmatpush1.msra.mxu0 0.0
    %1068 = vmatprep.subr.mxu0 0.0
    %1069 = vmatpush1.msra.mxu0 0.0
    %1070 = vmatprep.subr.mxu0 0.0
    %1071 = vmatpush1.msra.mxu0 0.0
    %1072 = vmatprep.subr.mxu0 0.0
    %1073 = vmatpush1.msra.mxu0 0.0
    %1074 = vmatprep.subr.mxu0 0.0
    %1075 = vmatpush1.msra.mxu0 0.0
    %1076 = vmatprep.subr.mxu0 0.0
    %1077 = vmatpush1.msra.mxu0 0.0
    %1078 = vmatprep.mubr.f32.mxu0 0.0
    %v1079 = vand.u32 %v633, 4294901760
    %1080 = vmatmul.mubr.f32.gmra.mrb[0].mxu0 %v1079
    %v1081 = vpop.f32.mrb[0].mxu0
    %v1082 = vadd.f32 %v1010, %v1081
    %v1083 = vpop.f32.mrb[0].mxu0
    %1084 = vdwg.mxu0
    %v1085 = vld [vmem:[#allocation2] sm:$0xff]
    %v1086 = vld [vmem:[#allocation2 + $0x8] sm:$0xff]
    %v1087 = vld [vmem:[%s2] sm:$0x3]
    %v1088 = vld [vmem:[%s3] sm:$0x3]
    %v1089 = vld [vmem:[#allocation8] sm:$0xff]
    %v1090 = vld [vmem:[#allocation8 + $0x8] sm:$0xff]
    %v1091 = vld [vmem:[#allocation8 + $0x10] sm:$0xff]
    %v1092 = vld [vmem:[#allocation8 + $0x18] sm:$0xff]
    %v1093 = vld [vmem:[#allocation8 + $0x20] sm:$0xff]
    %v1094 = vld [vmem:[#allocation8 + $0x28] sm:$0xff]
    %v1095 = vld [vmem:[#allocation8 + $0x30] sm:$0xff]
    %v1096 = vld [vmem:[#allocation8 + $0x38] sm:$0xff]
    %v1098 = vsel %vm95, %v1087, 0
    %v1100 = vand.u32 %v1090, 4294901760
    %1101 = vmatprep.subr.mxu0 %v1100
    %v1102 = vand.u32 %v1089, 4294901760
    %1103 = vmatpush1.msra.mxu0 %v1102
    %v1104 = vand.u32 %v1092, 4294901760
    %1105 = vmatprep.subr.mxu0 %v1104
    %v1106 = vand.u32 %v1091, 4294901760
    %1107 = vmatpush1.msra.mxu0 %v1106
    %v1108 = vand.u32 %v1094, 4294901760
    %1109 = vmatprep.subr.mxu0 %v1108
    %v1110 = vand.u32 %v1093, 4294901760
    %1111 = vmatpush1.msra.mxu0 %v1110
    %v1112 = vand.u32 %v1096, 4294901760
    %1113 = vmatprep.subr.mxu0 %v1112
    %v1114 = vand.u32 %v1095, 4294901760
    %1115 = vmatpush1.msra.mxu0 %v1114
    %1116 = vmatprep.subr.mxu0 0.0
    %1117 = vmatpush1.msra.mxu0 0.0
    %1118 = vmatprep.subr.mxu0 0.0
    %1119 = vmatpush1.msra.mxu0 0.0
    %1120 = vmatprep.subr.mxu0 0.0
    %1121 = vmatpush1.msra.mxu0 0.0
    %1122 = vmatprep.subr.mxu0 0.0
    %1123 = vmatpush1.msra.mxu0 0.0
    %1124 = vmatprep.subr.mxu0 0.0
    %1125 = vmatpush1.msra.mxu0 0.0
    %1126 = vmatprep.subr.mxu0 0.0
    %1127 = vmatpush1.msra.mxu0 0.0
    %1128 = vmatprep.subr.mxu0 0.0
    %1129 = vmatpush1.msra.mxu0 0.0
    %1130 = vmatprep.subr.mxu0 0.0
    %1131 = vmatpush1.msra.mxu0 0.0
    %1132 = vmatprep.subr.mxu0 0.0
    %1133 = vmatpush1.msra.mxu0 0.0
    %1134 = vmatprep.subr.mxu0 0.0
    %1135 = vmatpush1.msra.mxu0 0.0
    %1136 = vmatprep.subr.mxu0 0.0
    %1137 = vmatpush1.msra.mxu0 0.0
    %1138 = vmatprep.subr.mxu0 0.0
    %1139 = vmatpush1.msra.mxu0 0.0
    %1140 = vmatprep.subr.mxu0 0.0
    %1141 = vmatpush1.msra.mxu0 0.0
    %1142 = vmatprep.subr.mxu0 0.0
    %1143 = vmatpush1.msra.mxu0 0.0
    %1144 = vmatprep.subr.mxu0 0.0
    %1145 = vmatpush1.msra.mxu0 0.0
    %1146 = vmatprep.subr.mxu0 0.0
    %1147 = vmatpush1.msra.mxu0 0.0
    %1148 = vmatprep.subr.mxu0 0.0
    %1149 = vmatpush1.msra.mxu0 0.0
    %1150 = vmatprep.subr.mxu0 0.0
    %1151 = vmatpush1.msra.mxu0 0.0
    %1152 = vmatprep.subr.mxu0 0.0
    %1153 = vmatpush1.msra.mxu0 0.0
    %1154 = vmatprep.subr.mxu0 0.0
    %1155 = vmatpush1.msra.mxu0 0.0
    %1156 = vmatprep.subr.mxu0 0.0
    %1157 = vmatpush1.msra.mxu0 0.0
    %1158 = vmatprep.subr.mxu0 0.0
    %1159 = vmatpush1.msra.mxu0 0.0
    %1160 = vmatprep.subr.mxu0 0.0
    %1161 = vmatpush1.msra.mxu0 0.0
    %1162 = vmatprep.subr.mxu0 0.0
    %1163 = vmatpush1.msra.mxu0 0.0
    %1164 = vmatprep.subr.mxu0 0.0
    %1165 = vmatpush1.msra.mxu0 0.0
    %1166 = vmatprep.subr.mxu0 0.0
    %1167 = vmatpush1.msra.mxu0 0.0
    %1168 = vmatprep.subr.mxu0 0.0
    %1169 = vmatpush1.msra.mxu0 0.0
    %1170 = vmatprep.subr.mxu0 0.0
    %1171 = vmatpush1.msra.mxu0 0.0
    %1172 = vmatprep.mubr.f32.mxu0 0.0
    %v1173 = vand.u32 %v1098, 4294901760
    %v1174 = vsub.f32 %v1098, %v1173
    %v1175 = vand.u32 %v1174, 4294901760
    %v1176 = vsub.f32 %v1174, %v1175
    %v1177 = vand.u32 %v1176, 4294901760
    %1178 = vmatmul.mubr.f32.gmra.mrb[0].mxu0 %v1177
    %v1179 = vpop.f32.mrb[0].mxu0
    %v1180 = vadd.f32 0.0, %v1179
    %v1181 = vpop.f32.mrb[0].mxu0
    %v1182 = vadd.f32 0.0, %v1181
    %1183 = vdwg.mxu0
    %v1184 = vand.u32 %v1090, 4294901760
    %v1185 = vsub.f32 %v1090, %v1184
    %v1186 = vand.u32 %v1185, 4294901760
    %v1187 = vsub.f32 %v1185, %v1186
    %v1188 = vand.u32 %v1187, 4294901760
    %1189 = vmatprep.subr.mxu0 %v1188
    %v1190 = vand.u32 %v1089, 4294901760
    %v1191 = vsub.f32 %v1089, %v1190
    %v1192 = vand.u32 %v1191, 4294901760
    %v1193 = vsub.f32 %v1191, %v1192
    %v1194 = vand.u32 %v1193, 4294901760
    %1195 = vmatpush1.msra.mxu0 %v1194
    %v1196 = vand.u32 %v1092, 4294901760
    %v1197 = vsub.f32 %v1092, %v1196
    %v1198 = vand.u32 %v1197, 4294901760
    %v1199 = vsub.f32 %v1197, %v1198
    %v1200 = vand.u32 %v1199, 4294901760
    %1201 = vmatprep.subr.mxu0 %v1200
    %v1202 = vand.u32 %v1091, 4294901760
    %v1203 = vsub.f32 %v1091, %v1202
    %v1204 = vand.u32 %v1203, 4294901760
    %v1205 = vsub.f32 %v1203, %v1204
    %v1206 = vand.u32 %v1205, 4294901760
    %1207 = vmatpush1.msra.mxu0 %v1206
    %v1208 = vand.u32 %v1094, 4294901760
    %v1209 = vsub.f32 %v1094, %v1208
    %v1210 = vand.u32 %v1209, 4294901760
    %v1211 = vsub.f32 %v1209, %v1210
    %v1212 = vand.u32 %v1211, 4294901760
    %1213 = vmatprep.subr.mxu0 %v1212
    %v1214 = vand.u32 %v1093, 4294901760
    %v1215 = vsub.f32 %v1093, %v1214
    %v1216 = vand.u32 %v1215, 4294901760
    %v1217 = vsub.f32 %v1215, %v1216
    %v1218 = vand.u32 %v1217, 4294901760
    %1219 = vmatpush1.msra.mxu0 %v1218
    %v1220 = vand.u32 %v1096, 4294901760
    %v1221 = vsub.f32 %v1096, %v1220
    %v1222 = vand.u32 %v1221, 4294901760
    %v1223 = vsub.f32 %v1221, %v1222
    %v1224 = vand.u32 %v1223, 4294901760
    %1225 = vmatprep.subr.mxu0 %v1224
    %v1226 = vand.u32 %v1095, 4294901760
    %v1227 = vsub.f32 %v1095, %v1226
    %v1228 = vand.u32 %v1227, 4294901760
    %v1229 = vsub.f32 %v1227, %v1228
    %v1230 = vand.u32 %v1229, 4294901760
    %1231 = vmatpush1.msra.mxu0 %v1230
    %1232 = vmatprep.subr.mxu0 0.0
    %1233 = vmatpush1.msra.mxu0 0.0
    %1234 = vmatprep.subr.mxu0 0.0
    %1235 = vmatpush1.msra.mxu0 0.0
    %1236 = vmatprep.subr.mxu0 0.0
    %1237 = vmatpush1.msra.mxu0 0.0
    %1238 = vmatprep.subr.mxu0 0.0
    %1239 = vmatpush1.msra.mxu0 0.0
    %1240 = vmatprep.subr.mxu0 0.0
    %1241 = vmatpush1.msra.mxu0 0.0
    %1242 = vmatprep.subr.mxu0 0.0
    %1243 = vmatpush1.msra.mxu0 0.0
    %1244 = vmatprep.subr.mxu0 0.0
    %1245 = vmatpush1.msra.mxu0 0.0
    %1246 = vmatprep.subr.mxu0 0.0
    %1247 = vmatpush1.msra.mxu0 0.0
    %1248 = vmatprep.subr.mxu0 0.0
    %1249 = vmatpush1.msra.mxu0 0.0
    %1250 = vmatprep.subr.mxu0 0.0
    %1251 = vmatpush1.msra.mxu0 0.0
    %1252 = vmatprep.subr.mxu0 0.0
    %1253 = vmatpush1.msra.mxu0 0.0
    %1254 = vmatprep.subr.mxu0 0.0
    %1255 = vmatpush1.msra.mxu0 0.0
    %1256 = vmatprep.subr.mxu0 0.0
    %1257 = vmatpush1.msra.mxu0 0.0
    %1258 = vmatprep.subr.mxu0 0.0
    %1259 = vmatpush1.msra.mxu0 0.0
    %1260 = vmatprep.subr.mxu0 0.0
    %1261 = vmatpush1.msra.mxu0 0.0
    %1262 = vmatprep.subr.mxu0 0.0
    %1263 = vmatpush1.msra.mxu0 0.0
    %1264 = vmatprep.subr.mxu0 0.0
    %1265 = vmatpush1.msra.mxu0 0.0
    %1266 = vmatprep.subr.mxu0 0.0
    %1267 = vmatpush1.msra.mxu0 0.0
    %1268 = vmatprep.subr.mxu0 0.0
    %1269 = vmatpush1.msra.mxu0 0.0
    %1270 = vmatprep.subr.mxu0 0.0
    %1271 = vmatpush1.msra.mxu0 0.0
    %1272 = vmatprep.subr.mxu0 0.0
    %1273 = vmatpush1.msra.mxu0 0.0
    %1274 = vmatprep.subr.mxu0 0.0
    %1275 = vmatpush1.msra.mxu0 0.0
    %1276 = vmatprep.subr.mxu0 0.0
    %1277 = vmatpush1.msra.mxu0 0.0
    %1278 = vmatprep.subr.mxu0 0.0
    %1279 = vmatpush1.msra.mxu0 0.0
    %1280 = vmatprep.subr.mxu0 0.0
    %1281 = vmatpush1.msra.mxu0 0.0
    %1282 = vmatprep.subr.mxu0 0.0
    %1283 = vmatpush1.msra.mxu0 0.0
    %1284 = vmatprep.subr.mxu0 0.0
    %1285 = vmatpush1.msra.mxu0 0.0
    %1286 = vmatprep.subr.mxu0 0.0
    %1287 = vmatpush1.msra.mxu0 0.0
    %1288 = vmatprep.mubr.f32.mxu0 0.0
    %v1289 = vand.u32 %v1098, 4294901760
    %1290 = vmatmul.mubr.f32.gmra.mrb[0].mxu0 %v1289
    %v1291 = vpop.f32.mrb[0].mxu0
    %v1292 = vadd.f32 %v1180, %v1291
    %v1293 = vpop.f32.mrb[0].mxu0
    %v1294 = vadd.f32 %v1182, %v1293
    %1295 = vdwg.mxu0
    %v1296 = vand.u32 %v1090, 4294901760
    %v1297 = vsub.f32 %v1090, %v1296
    %1298 = vmatprep.subr.mxu0 %v1297
    %v1299 = vand.u32 %v1089, 4294901760
    %v1300 = vsub.f32 %v1089, %v1299
    %1301 = vmatpush1.msra.mxu0 %v1300
    %v1302 = vand.u32 %v1092, 4294901760
    %v1303 = vsub.f32 %v1092, %v1302
    %1304 = vmatprep.subr.mxu0 %v1303
    %v1305 = vand.u32 %v1091, 4294901760
    %v1306 = vsub.f32 %v1091, %v1305
    %1307 = vmatpush1.msra.mxu0 %v1306
    %v1308 = vand.u32 %v1094, 4294901760
    %v1309 = vsub.f32 %v1094, %v1308
    %1310 = vmatprep.subr.mxu0 %v1309
    %v1311 = vand.u32 %v1093, 4294901760
    %v1312 = vsub.f32 %v1093, %v1311
    %1313 = vmatpush1.msra.mxu0 %v1312
    %v1314 = vand.u32 %v1096, 4294901760
    %v1315 = vsub.f32 %v1096, %v1314
    %1316 = vmatprep.subr.mxu0 %v1315
    %v1317 = vand.u32 %v1095, 4294901760
    %v1318 = vsub.f32 %v1095, %v1317
    %1319 = vmatpush1.msra.mxu0 %v1318
    %1320 = vmatprep.subr.mxu0 0.0
    %1321 = vmatpush1.msra.mxu0 0.0
    %1322 = vmatprep.subr.mxu0 0.0
    %1323 = vmatpush1.msra.mxu0 0.0
    %1324 = vmatprep.subr.mxu0 0.0
    %1325 = vmatpush1.msra.mxu0 0.0
    %1326 = vmatprep.subr.mxu0 0.0
    %1327 = vmatpush1.msra.mxu0 0.0
    %1328 = vmatprep.subr.mxu0 0.0
    %1329 = vmatpush1.msra.mxu0 0.0
    %1330 = vmatprep.subr.mxu0 0.0
    %1331 = vmatpush1.msra.mxu0 0.0
    %1332 = vmatprep.subr.mxu0 0.0
    %1333 = vmatpush1.msra.mxu0 0.0
    %1334 = vmatprep.subr.mxu0 0.0
    %1335 = vmatpush1.msra.mxu0 0.0
    %1336 = vmatprep.subr.mxu0 0.0
    %1337 = vmatpush1.msra.mxu0 0.0
    %1338 = vmatprep.subr.mxu0 0.0
    %1339 = vmatpush1.msra.mxu0 0.0
    %1340 = vmatprep.subr.mxu0 0.0
    %1341 = vmatpush1.msra.mxu0 0.0
    %1342 = vmatprep.subr.mxu0 0.0
    %1343 = vmatpush1.msra.mxu0 0.0
    %1344 = vmatprep.subr.mxu0 0.0
    %1345 = vmatpush1.msra.mxu0 0.0
    %1346 = vmatprep.subr.mxu0 0.0
    %1347 = vmatpush1.msra.mxu0 0.0
    %1348 = vmatprep.subr.mxu0 0.0
    %1349 = vmatpush1.msra.mxu0 0.0
    %1350 = vmatprep.subr.mxu0 0.0
    %1351 = vmatpush1.msra.mxu0 0.0
    %1352 = vmatprep.subr.mxu0 0.0
    %1353 = vmatpush1.msra.mxu0 0.0
    %1354 = vmatprep.subr.mxu0 0.0
    %1355 = vmatpush1.msra.mxu0 0.0
    %1356 = vmatprep.subr.mxu0 0.0
    %1357 = vmatpush1.msra.mxu0 0.0
    %1358 = vmatprep.subr.mxu0 0.0
    %1359 = vmatpush1.msra.mxu0 0.0
    %1360 = vmatprep.subr.mxu0 0.0
    %1361 = vmatpush1.msra.mxu0 0.0
    %1362 = vmatprep.subr.mxu0 0.0
    %1363 = vmatpush1.msra.mxu0 0.0
    %1364 = vmatprep.subr.mxu0 0.0
    %1365 = vmatpush1.msra.mxu0 0.0
    %1366 = vmatprep.subr.mxu0 0.0
    %1367 = vmatpush1.msra.mxu0 0.0
    %1368 = vmatprep.subr.mxu0 0.0
    %1369 = vmatpush1.msra.mxu0 0.0
    %1370 = vmatprep.subr.mxu0 0.0
    %1371 = vmatpush1.msra.mxu0 0.0
    %1372 = vmatprep.subr.mxu0 0.0
    %1373 = vmatpush1.msra.mxu0 0.0
    %1374 = vmatprep.subr.mxu0 0.0
    %1375 = vmatpush1.msra.mxu0 0.0
    %1376 = vmatprep.mubr.f32.mxu0 0.0
    %v1377 = vand.u32 %v1098, 4294901760
    %v1378 = vsub.f32 %v1098, %v1377
    %1379 = vmatmul.mubr.f32.gmra.mrb[0].mxu0 %v1378
    %v1380 = vpop.f32.mrb[0].mxu0
    %v1381 = vadd.f32 %v1292, %v1380
    %v1382 = vpop.f32.mrb[0].mxu0
    %v1383 = vadd.f32 %v1294, %v1382
    %1384 = vdwg.mxu0
    %v1385 = vand.u32 %v1090, 4294901760
    %1386 = vmatprep.subr.mxu0 %v1385
    %v1387 = vand.u32 %v1089, 4294901760
    %1388 = vmatpush1.msra.mxu0 %v1387
    %v1389 = vand.u32 %v1092, 4294901760
    %1390 = vmatprep.subr.mxu0 %v1389
    %v1391 = vand.u32 %v1091, 4294901760
    %1392 = vmatpush1.msra.mxu0 %v1391
    %v1393 = vand.u32 %v1094, 4294901760
    %1394 = vmatprep.subr.mxu0 %v1393
    %v1395 = vand.u32 %v1093, 4294901760
    %1396 = vmatpush1.msra.mxu0 %v1395
    %v1397 = vand.u32 %v1096, 4294901760
    %1398 = vmatprep.subr.mxu0 %v1397
    %v1399 = vand.u32 %v1095, 4294901760
    %1400 = vmatpush1.msra.mxu0 %v1399
    %1401 = vmatprep.subr.mxu0 0.0
    %1402 = vmatpush1.msra.mxu0 0.0
    %1403 = vmatprep.subr.mxu0 0.0
    %1404 = vmatpush1.msra.mxu0 0.0
    %1405 = vmatprep.subr.mxu0 0.0
    %1406 = vmatpush1.msra.mxu0 0.0
    %1407 = vmatprep.subr.mxu0 0.0
    %1408 = vmatpush1.msra.mxu0 0.0
    %1409 = vmatprep.subr.mxu0 0.0
    %1410 = vmatpush1.msra.mxu0 0.0
    %1411 = vmatprep.subr.mxu0 0.0
    %1412 = vmatpush1.msra.mxu0 0.0
    %1413 = vmatprep.subr.mxu0 0.0
    %1414 = vmatpush1.msra.mxu0 0.0
    %1415 = vmatprep.subr.mxu0 0.0
    %1416 = vmatpush1.msra.mxu0 0.0
    %1417 = vmatprep.subr.mxu0 0.0
    %1418 = vmatpush1.msra.mxu0 0.0
    %1419 = vmatprep.subr.mxu0 0.0
    %1420 = vmatpush1.msra.mxu0 0.0
    %1421 = vmatprep.subr.mxu0 0.0
    %1422 = vmatpush1.msra.mxu0 0.0
    %1423 = vmatprep.subr.mxu0 0.0
    %1424 = vmatpush1.msra.mxu0 0.0
    %1425 = vmatprep.subr.mxu0 0.0
    %1426 = vmatpush1.msra.mxu0 0.0
    %1427 = vmatprep.subr.mxu0 0.0
    %1428 = vmatpush1.msra.mxu0 0.0
    %1429 = vmatprep.subr.mxu0 0.0
    %1430 = vmatpush1.msra.mxu0 0.0
    %1431 = vmatprep.subr.mxu0 0.0
    %1432 = vmatpush1.msra.mxu0 0.0
    %1433 = vmatprep.subr.mxu0 0.0
    %1434 = vmatpush1.msra.mxu0 0.0
    %1435 = vmatprep.subr.mxu0 0.0
    %1436 = vmatpush1.msra.mxu0 0.0
    %1437 = vmatprep.subr.mxu0 0.0
    %1438 = vmatpush1.msra.mxu0 0.0
    %1439 = vmatprep.subr.mxu0 0.0
    %1440 = vmatpush1.msra.mxu0 0.0
    %1441 = vmatprep.subr.mxu0 0.0
    %1442 = vmatpush1.msra.mxu0 0.0
    %1443 = vmatprep.subr.mxu0 0.0
    %1444 = vmatpush1.msra.mxu0 0.0
    %1445 = vmatprep.subr.mxu0 0.0
    %1446 = vmatpush1.msra.mxu0 0.0
    %1447 = vmatprep.subr.mxu0 0.0
    %1448 = vmatpush1.msra.mxu0 0.0
    %1449 = vmatprep.subr.mxu0 0.0
    %1450 = vmatpush1.msra.mxu0 0.0
    %1451 = vmatprep.subr.mxu0 0.0
    %1452 = vmatpush1.msra.mxu0 0.0
    %1453 = vmatprep.subr.mxu0 0.0
    %1454 = vmatpush1.msra.mxu0 0.0
    %1455 = vmatprep.subr.mxu0 0.0
    %1456 = vmatpush1.msra.mxu0 0.0
    %1457 = vmatprep.mubr.f32.mxu0 0.0
    %v1458 = vand.u32 %v1098, 4294901760
    %v1459 = vsub.f32 %v1098, %v1458
    %v1460 = vand.u32 %v1459, 4294901760
    %1461 = vmatmul.mubr.f32.gmra.mrb[0].mxu0 %v1460
    %v1462 = vpop.f32.mrb[0].mxu0
    %v1463 = vadd.f32 %v1381, %v1462
    %v1464 = vpop.f32.mrb[0].mxu0
    %v1465 = vadd.f32 %v1383, %v1464
    %1466 = vdwg.mxu0
    %v1467 = vand.u32 %v1090, 4294901760
    %v1468 = vsub.f32 %v1090, %v1467
    %v1469 = vand.u32 %v1468, 4294901760
    %1470 = vmatprep.subr.mxu0 %v1469
    %v1471 = vand.u32 %v1089, 4294901760
    %v1472 = vsub.f32 %v1089, %v1471
    %v1473 = vand.u32 %v1472, 4294901760
    %1474 = vmatpush1.msra.mxu0 %v1473
    %v1475 = vand.u32 %v1092, 4294901760
    %v1476 = vsub.f32 %v1092, %v1475
    %v1477 = vand.u32 %v1476, 4294901760
    %1478 = vmatprep.subr.mxu0 %v1477
    %v1479 = vand.u32 %v1091, 4294901760
    %v1480 = vsub.f32 %v1091, %v1479
    %v1481 = vand.u32 %v1480, 4294901760
    %1482 = vmatpush1.msra.mxu0 %v1481
    %v1483 = vand.u32 %v1094, 4294901760
    %v1484 = vsub.f32 %v1094, %v1483
    %v1485 = vand.u32 %v1484, 4294901760
    %1486 = vmatprep.subr.mxu0 %v1485
    %v1487 = vand.u32 %v1093, 4294901760
    %v1488 = vsub.f32 %v1093, %v1487
    %v1489 = vand.u32 %v1488, 4294901760
    %1490 = vmatpush1.msra.mxu0 %v1489
    %v1491 = vand.u32 %v1096, 4294901760
    %v1492 = vsub.f32 %v1096, %v1491
    %v1493 = vand.u32 %v1492, 4294901760
    %1494 = vmatprep.subr.mxu0 %v1493
    %v1495 = vand.u32 %v1095, 4294901760
    %v1496 = vsub.f32 %v1095, %v1495
    %v1497 = vand.u32 %v1496, 4294901760
    %1498 = vmatpush1.msra.mxu0 %v1497
    %1499 = vmatprep.subr.mxu0 0.0
    %1500 = vmatpush1.msra.mxu0 0.0
    %1501 = vmatprep.subr.mxu0 0.0
    %1502 = vmatpush1.msra.mxu0 0.0
    %1503 = vmatprep.subr.mxu0 0.0
    %1504 = vmatpush1.msra.mxu0 0.0
    %1505 = vmatprep.subr.mxu0 0.0
    %1506 = vmatpush1.msra.mxu0 0.0
    %1507 = vmatprep.subr.mxu0 0.0
    %1508 = vmatpush1.msra.mxu0 0.0
    %1509 = vmatprep.subr.mxu0 0.0
    %1510 = vmatpush1.msra.mxu0 0.0
    %1511 = vmatprep.subr.mxu0 0.0
    %1512 = vmatpush1.msra.mxu0 0.0
    %1513 = vmatprep.subr.mxu0 0.0
    %1514 = vmatpush1.msra.mxu0 0.0
    %1515 = vmatprep.subr.mxu0 0.0
    %1516 = vmatpush1.msra.mxu0 0.0
    %1517 = vmatprep.subr.mxu0 0.0
    %1518 = vmatpush1.msra.mxu0 0.0
    %1519 = vmatprep.subr.mxu0 0.0
    %1520 = vmatpush1.msra.mxu0 0.0
    %1521 = vmatprep.subr.mxu0 0.0
    %1522 = vmatpush1.msra.mxu0 0.0
    %1523 = vmatprep.subr.mxu0 0.0
    %1524 = vmatpush1.msra.mxu0 0.0
    %1525 = vmatprep.subr.mxu0 0.0
    %1526 = vmatpush1.msra.mxu0 0.0
    %1527 = vmatprep.subr.mxu0 0.0
    %1528 = vmatpush1.msra.mxu0 0.0
    %1529 = vmatprep.subr.mxu0 0.0
    %1530 = vmatpush1.msra.mxu0 0.0
    %1531 = vmatprep.subr.mxu0 0.0
    %1532 = vmatpush1.msra.mxu0 0.0
    %1533 = vmatprep.subr.mxu0 0.0
    %1534 = vmatpush1.msra.mxu0 0.0
    %1535 = vmatprep.subr.mxu0 0.0
    %1536 = vmatpush1.msra.mxu0 0.0
    %1537 = vmatprep.subr.mxu0 0.0
    %1538 = vmatpush1.msra.mxu0 0.0
    %1539 = vmatprep.subr.mxu0 0.0
    %1540 = vmatpush1.msra.mxu0 0.0
    %1541 = vmatprep.subr.mxu0 0.0
    %1542 = vmatpush1.msra.mxu0 0.0
    %1543 = vmatprep.subr.mxu0 0.0
    %1544 = vmatpush1.msra.mxu0 0.0
    %1545 = vmatprep.subr.mxu0 0.0
    %1546 = vmatpush1.msra.mxu0 0.0
    %1547 = vmatprep.subr.mxu0 0.0
    %1548 = vmatpush1.msra.mxu0 0.0
    %1549 = vmatprep.subr.mxu0 0.0
    %1550 = vmatpush1.msra.mxu0 0.0
    %1551 = vmatprep.subr.mxu0 0.0
    %1552 = vmatpush1.msra.mxu0 0.0
    %1553 = vmatprep.subr.mxu0 0.0
    %1554 = vmatpush1.msra.mxu0 0.0
    %1555 = vmatprep.mubr.f32.mxu0 0.0
    %v1556 = vand.u32 %v1098, 4294901760
    %1557 = vmatmul.mubr.f32.gmra.mrb[0].mxu0 %v1556
    %v1558 = vpop.f32.mrb[0].mxu0
    %v1559 = vadd.f32 %v1463, %v1558
    %v1560 = vpop.f32.mrb[0].mxu0
    %v1561 = vadd.f32 %v1465, %v1560
    %1562 = vdwg.mxu0
    %v1563 = vand.u32 %v1090, 4294901760
    %1564 = vmatprep.subr.mxu0 %v1563
    %v1565 = vand.u32 %v1089, 4294901760
    %1566 = vmatpush1.msra.mxu0 %v1565
    %v1567 = vand.u32 %v1092, 4294901760
    %1568 = vmatprep.subr.mxu0 %v1567
    %v1569 = vand.u32 %v1091, 4294901760
    %1570 = vmatpush1.msra.mxu0 %v1569
    %v1571 = vand.u32 %v1094, 4294901760
    %1572 = vmatprep.subr.mxu0 %v1571
    %v1573 = vand.u32 %v1093, 4294901760
    %1574 = vmatpush1.msra.mxu0 %v1573
    %v1575 = vand.u32 %v1096, 4294901760
    %1576 = vmatprep.subr.mxu0 %v1575
    %v1577 = vand.u32 %v1095, 4294901760
    %1578 = vmatpush1.msra.mxu0 %v1577
    %1579 = vmatprep.subr.mxu0 0.0
    %1580 = vmatpush1.msra.mxu0 0.0
    %1581 = vmatprep.subr.mxu0 0.0
    %1582 = vmatpush1.msra.mxu0 0.0
    %1583 = vmatprep.subr.mxu0 0.0
    %1584 = vmatpush1.msra.mxu0 0.0
    %1585 = vmatprep.subr.mxu0 0.0
    %1586 = vmatpush1.msra.mxu0 0.0
    %1587 = vmatprep.subr.mxu0 0.0
    %1588 = vmatpush1.msra.mxu0 0.0
    %1589 = vmatprep.subr.mxu0 0.0
    %1590 = vmatpush1.msra.mxu0 0.0
    %1591 = vmatprep.subr.mxu0 0.0
    %1592 = vmatpush1.msra.mxu0 0.0
    %1593 = vmatprep.subr.mxu0 0.0
    %1594 = vmatpush1.msra.mxu0 0.0
    %1595 = vmatprep.subr.mxu0 0.0
    %1596 = vmatpush1.msra.mxu0 0.0
    %1597 = vmatprep.subr.mxu0 0.0
    %1598 = vmatpush1.msra.mxu0 0.0
    %1599 = vmatprep.subr.mxu0 0.0
    %1600 = vmatpush1.msra.mxu0 0.0
    %1601 = vmatprep.subr.mxu0 0.0
    %1602 = vmatpush1.msra.mxu0 0.0
    %1603 = vmatprep.subr.mxu0 0.0
    %1604 = vmatpush1.msra.mxu0 0.0
    %1605 = vmatprep.subr.mxu0 0.0
    %1606 = vmatpush1.msra.mxu0 0.0
    %1607 = vmatprep.subr.mxu0 0.0
    %1608 = vmatpush1.msra.mxu0 0.0
    %1609 = vmatprep.subr.mxu0 0.0
    %1610 = vmatpush1.msra.mxu0 0.0
    %1611 = vmatprep.subr.mxu0 0.0
    %1612 = vmatpush1.msra.mxu0 0.0
    %1613 = vmatprep.subr.mxu0 0.0
    %1614 = vmatpush1.msra.mxu0 0.0
    %1615 = vmatprep.subr.mxu0 0.0
    %1616 = vmatpush1.msra.mxu0 0.0
    %1617 = vmatprep.subr.mxu0 0.0
    %1618 = vmatpush1.msra.mxu0 0.0
    %1619 = vmatprep.subr.mxu0 0.0
    %1620 = vmatpush1.msra.mxu0 0.0
    %1621 = vmatprep.subr.mxu0 0.0
    %1622 = vmatpush1.msra.mxu0 0.0
    %1623 = vmatprep.subr.mxu0 0.0
    %1624 = vmatpush1.msra.mxu0 0.0
    %1625 = vmatprep.subr.mxu0 0.0
    %1626 = vmatpush1.msra.mxu0 0.0
    %1627 = vmatprep.subr.mxu0 0.0
    %1628 = vmatpush1.msra.mxu0 0.0
    %1629 = vmatprep.subr.mxu0 0.0
    %1630 = vmatpush1.msra.mxu0 0.0
    %1631 = vmatprep.subr.mxu0 0.0
    %1632 = vmatpush1.msra.mxu0 0.0
    %1633 = vmatprep.subr.mxu0 0.0
    %1634 = vmatpush1.msra.mxu0 0.0
    %1635 = vmatprep.mubr.f32.mxu0 0.0
    %v1636 = vand.u32 %v1098, 4294901760
    %1637 = vmatmul.mubr.f32.gmra.mrb[0].mxu0 %v1636
    %v1638 = vpop.f32.mrb[0].mxu0
    %v1639 = vadd.f32 %v1559, %v1638
    %v1640 = vpop.f32.mrb[0].mxu0
    %v1641 = vadd.f32 %v1561, %v1640
    %1642 = vdwg.mxu0
    %v1645 = vunpack.c.l.s4 1966171168
    %v1646 = vunpack.c.0.s8 %v1645
    %v1647 = vlaneseq
    %v1648 = vshrl.u32 %v1647, 7
    %v1649 = vsub.s32 %v1646, %v1648
    %v1650 = vrot.slane %v1639, %v1649
    %v1651 = vcombine.high %v1650, %v1650
    %v1653 = vunpack.c.l.s4 1966171168
    %v1654 = vunpack.c.0.s8 %v1653
    %v1655 = vlaneseq
    %v1656 = vshrl.u32 %v1655, 7
    %v1657 = vsub.s32 %v1654, %v1656
    %v1658 = vrot.slane %v1650, %v1657
    %v1660 = vunpack.c.l.s4 1966171168
    %v1661 = vunpack.c.0.s8 %v1660
    %v1662 = vlaneseq
    %v1663 = vshrl.u32 %v1662, 7
    %v1664 = vsub.s32 %v1661, %v1663
    %v1665 = vrot.slane %v1651, %v1664
    %v1666 = vlaneseq
    %v1667 = vshrl.u32 %v1666, 7
    %v1668 = vsub.s32 0, %v1667
    %v1669 = vrot.slane %v1658, %v1668
    %v1670 = vlaneseq
    %v1671 = vshrl.u32 %v1670, 7
    %v1672 = vsub.s32 0, %v1671
    %v1673 = vrot.slane %v1665, %v1672
    %v1676 = vadd.f32 %v621, %v1669
    %v1677 = vadd.f32 %v627, %v1673
    %v1678 = vtanh.pop %v1676
    %v1679 = vtanh.pop %v1677
    %v1680 = vlaneseq
    %v1681 = vshrl.u32 %v1680, 7
    %v1682 = vsub.s32 0, %v1681
    %v1683 = vrot.slane %v91, %v1682
    %v1684 = vmul.f32 %v1678, %v1683
    %v1685 = vmul.f32 %v1679, %v1683
    %1686 = vadd.xlane.f32.xlu0 %v1684
    %v1687 = vpop.xlane.xlu0 %1686
    %1688 = vadd.xlane.f32.xlu0 %v1685
    %v1689 = vpop.xlane.xlu0 %1688
    %v1692 = vlaneseq
    %v1693 = vand.u32 %v1692, 127
    %v1694 = vlaneseq
    %v1695 = vshrl.u32 %v1694, 7
    %v1696 = vsub.s32 %v1693, %v1695
    %v1697 = vrot.slane %v1687, %v1696
    %v1698 = vlaneseq
    %v1699 = vshrl.u32 %v1698, 7
    %v1700 = vsub.s32 %v1693, %v1699
    %v1701 = vrot.slane %v1689, %v1700
    %vm1702 = vcmask 1041409
    %v1703 = vsel %vm1702, %v1701, %v1697
    %vm1705 = vcmask 58368
    %v1706 = vsel %vm1705, %v1703, -inf
    %1707 = vmax.xlane.f32.xlu0 %v1706
    %v1708 = vpop.xlane.xlu0 %1707
    %v1710 = vlaneseq
    %v1711 = vshrl.u32 %v1710, 7
    %v1712 = vsub.s32 0, %v1711
    %v1713 = vrot.slane %v1708, %v1712
    %v1714 = vlaneseq
    %v1715 = vshrl.u32 %v1714, 7
    %v1716 = vsub.s32 1, %v1715
    %v1717 = vrot.slane %v1708, %v1716
    %v1720 = vsub.f32 %v1687, %v1713
    %v1721 = vsub.f32 %v1689, %v1717
    %v1722 = vmul.f32 %v1720, 1.442695
    %v1723 = vpow.pop %v1722
    %v1724 = vmul.f32 %v1721, 1.442695
    %v1725 = vpow.pop %v1724
    %1728 = vset.pattern.permute.xlu0 0
    %1729 = vperm.xlu0 %1728, %v1723
    %v1730 = vpop.permute.xlu0 %1729
    %1731 = vset.pattern.permute.xlu0 0
    %1732 = vperm.xlu0 %1731, %v1725
    %v1733 = vpop.permute.xlu0 %1732
    %v1734 = vlaneseq
    %v1735 = vshrl.u32 %v1734, 7
    %v1736 = vsub.s32 %v1693, %v1735
    %v1737 = vrot.slane %v1730, %v1736
    %v1738 = vlaneseq
    %v1739 = vshrl.u32 %v1738, 7
    %v1740 = vsub.s32 %v1693, %v1739
    %v1741 = vrot.slane %v1733, %v1740
    %v1742 = vsel %vm1702, %v1741, %v1737
    %v1744 = vsel %vm1705, %v1742, 0.0
    %1745 = vadd.xlane.f32.xlu0 %v1744
    %v1746 = vpop.xlane.xlu0 %1745
    %v1748 = vlaneseq
    %v1749 = vshrl.u32 %v1748, 7
    %v1750 = vsub.s32 0, %v1749
    %v1751 = vrot.slane %v1746, %v1750
    %v1752 = vlaneseq
    %v1753 = vshrl.u32 %v1752, 7
    %v1754 = vsub.s32 1, %v1753
    %v1755 = vrot.slane %v1746, %v1754
    %v1758 = vrcp.pop %v1751
    %v1759 = vmul.f32 %v1723, %v1758
    %v1760 = vrcp.pop %v1755
    %v1761 = vmul.f32 %v1725, %v1760
    %1763 = vset.pattern.permute.xlu0 0
    %1764 = vperm.xlu0 %1763, %v1759
    %v1765 = vpop.permute.xlu0 %1764
    %1768 = vset.pattern.permute.xlu0 0
    %1769 = vperm.xlu0 %1768, %v1761
    %v1770 = vpop.permute.xlu0 %1769
    %v1772 = vmul.f32 %v1765, %v1085
    %v1773 = vmul.f32 %v1770, %v1086
    %v1774 = vsel %vm95, %v1772, 0.0
    %v1775 = vrot.slane %v1774, 4
    %v1776 = vadd.f32 %v1774, %v1775
    %v1777 = vrot.slane %v1776, 2
    %v1778 = vadd.f32 %v1776, %v1777
    %v1779 = vrot.slane %v1778, 1
    %v1780 = vadd.f32 %v1778, %v1779
    %v1781 = vsel %vm95, %v1773, 0.0
    %v1782 = vrot.slane %v1781, 4
    %v1783 = vadd.f32 %v1781, %v1782
    %v1784 = vrot.slane %v1783, 2
    %v1785 = vadd.f32 %v1783, %v1784
    %v1786 = vrot.slane %v1785, 1
    %v1787 = vadd.f32 %v1785, %v1786
    %v1790 = vsel %vm1702, %v1787, %v1780
    %v1791 = vsel %vm95, %v1790, 0
    %1793 = vmatprep.subr.mxu0 0.0
    %v1794 = vand.u32 %v86, 4294901760
    %1795 = vmatpush1.msra.mxu0 %v1794
    %1796 = vmatprep.subr.mxu0 0.0
    %v1797 = vand.u32 %v87, 4294901760
    %1798 = vmatpush1.msra.mxu0 %v1797
    %1799 = vmatprep.subr.mxu0 0.0
    %v1800 = vand.u32 %v88, 4294901760
    %1801 = vmatpush1.msra.mxu0 %v1800
    %1802 = vmatprep.subr.mxu0 0.0
    %v1803 = vand.u32 %v89, 4294901760
    %1804 = vmatpush1.msra.mxu0 %v1803
    %1805 = vmatprep.subr.mxu0 0.0
    %1806 = vmatpush1.msra.mxu0 0.0
    %1807 = vmatprep.subr.mxu0 0.0
    %1808 = vmatpush1.msra.mxu0 0.0
    %1809 = vmatprep.subr.mxu0 0.0
    %1810 = vmatpush1.msra.mxu0 0.0
    %1811 = vmatprep.subr.mxu0 0.0
    %1812 = vmatpush1.msra.mxu0 0.0
    %1813 = vmatprep.subr.mxu0 0.0
    %1814 = vmatpush1.msra.mxu0 0.0
    %1815 = vmatprep.subr.mxu0 0.0
    %1816 = vmatpush1.msra.mxu0 0.0
    %1817 = vmatprep.subr.mxu0 0.0
    %1818 = vmatpush1.msra.mxu0 0.0
    %1819 = vmatprep.subr.mxu0 0.0
    %1820 = vmatpush1.msra.mxu0 0.0
    %1821 = vmatprep.subr.mxu0 0.0
    %1822 = vmatpush1.msra.mxu0 0.0
    %1823 = vmatprep.subr.mxu0 0.0
    %1824 = vmatpush1.msra.mxu0 0.0
    %1825 = vmatprep.subr.mxu0 0.0
    %1826 = vmatpush1.msra.mxu0 0.0
    %1827 = vmatprep.subr.mxu0 0.0
    %1828 = vmatpush1.msra.mxu0 0.0
    %1829 = vmatprep.subr.mxu0 0.0
    %1830 = vmatpush1.msra.mxu0 0.0
    %1831 = vmatprep.subr.mxu0 0.0
    %1832 = vmatpush1.msra.mxu0 0.0
    %1833 = vmatprep.subr.mxu0 0.0
    %1834 = vmatpush1.msra.mxu0 0.0
    %1835 = vmatprep.subr.mxu0 0.0
    %1836 = vmatpush1.msra.mxu0 0.0
    %1837 = vmatprep.subr.mxu0 0.0
    %1838 = vmatpush1.msra.mxu0 0.0
    %1839 = vmatprep.subr.mxu0 0.0
    %1840 = vmatpush1.msra.mxu0 0.0
    %1841 = vmatprep.subr.mxu0 0.0
    %1842 = vmatpush1.msra.mxu0 0.0
    %1843 = vmatprep.subr.mxu0 0.0
    %1844 = vmatpush1.msra.mxu0 0.0
    %1845 = vmatprep.subr.mxu0 0.0
    %1846 = vmatpush1.msra.mxu0 0.0
    %1847 = vmatprep.subr.mxu0 0.0
    %1848 = vmatpush1.msra.mxu0 0.0
    %1849 = vmatprep.subr.mxu0 0.0
    %1850 = vmatpush1.msra.mxu0 0.0
    %1851 = vmatprep.subr.mxu0 0.0
    %1852 = vmatpush1.msra.mxu0 0.0
    %1853 = vmatprep.subr.mxu0 0.0
    %1854 = vmatpush1.msra.mxu0 0.0
    %1855 = vmatprep.subr.mxu0 0.0
    %1856 = vmatpush1.msra.mxu0 0.0
    %1857 = vmatprep.subr.mxu0 0.0
    %1858 = vmatpush1.msra.mxu0 0.0
    %1859 = vmatprep.subr.mxu0 0.0
    %1860 = vmatpush1.msra.mxu0 0.0
    %1861 = vmatprep.mubr.f32.mxu0 0.0
    %v1862 = vand.u32 %v1791, 4294901760
    %v1863 = vsub.f32 %v1791, %v1862
    %v1864 = vand.u32 %v1863, 4294901760
    %v1865 = vsub.f32 %v1863, %v1864
    %v1866 = vand.u32 %v1865, 4294901760
    %1867 = vmatmul.mubr.f32.gmra.mrb[0].mxu0 %v1866
    %v1868 = vpop.f32.mrb[0].mxu0
    %v1869 = vadd.f32 %v1641, %v1868
    %v1870 = vpop.f32.mrb[0].mxu0
    %1871 = vdwg.mxu0
    %1872 = vmatprep.subr.mxu0 0.0
    %v1873 = vand.u32 %v86, 4294901760
    %v1874 = vsub.f32 %v86, %v1873
    %v1875 = vand.u32 %v1874, 4294901760
    %v1876 = vsub.f32 %v1874, %v1875
    %v1877 = vand.u32 %v1876, 4294901760
    %1878 = vmatpush1.msra.mxu0 %v1877
    %1879 = vmatprep.subr.mxu0 0.0
    %v1880 = vand.u32 %v87, 4294901760
    %v1881 = vsub.f32 %v87, %v1880
    %v1882 = vand.u32 %v1881, 4294901760
    %v1883 = vsub.f32 %v1881, %v1882
    %v1884 = vand.u32 %v1883, 4294901760
    %1885 = vmatpush1.msra.mxu0 %v1884
    %1886 = vmatprep.subr.mxu0 0.0
    %v1887 = vand.u32 %v88, 4294901760
    %v1888 = vsub.f32 %v88, %v1887
    %v1889 = vand.u32 %v1888, 4294901760
    %v1890 = vsub.f32 %v1888, %v1889
    %v1891 = vand.u32 %v1890, 4294901760
    %1892 = vmatpush1.msra.mxu0 %v1891
    %1893 = vmatprep.subr.mxu0 0.0
    %v1894 = vand.u32 %v89, 4294901760
    %v1895 = vsub.f32 %v89, %v1894
    %v1896 = vand.u32 %v1895, 4294901760
    %v1897 = vsub.f32 %v1895, %v1896
    %v1898 = vand.u32 %v1897, 4294901760
    %1899 = vmatpush1.msra.mxu0 %v1898
    %1900 = vmatprep.subr.mxu0 0.0
    %1901 = vmatpush1.msra.mxu0 0.0
    %1902 = vmatprep.subr.mxu0 0.0
    %1903 = vmatpush1.msra.mxu0 0.0
    %1904 = vmatprep.subr.mxu0 0.0
    %1905 = vmatpush1.msra.mxu0 0.0
    %1906 = vmatprep.subr.mxu0 0.0
    %1907 = vmatpush1.msra.mxu0 0.0
    %1908 = vmatprep.subr.mxu0 0.0
    %1909 = vmatpush1.msra.mxu0 0.0
    %1910 = vmatprep.subr.mxu0 0.0
    %1911 = vmatpush1.msra.mxu0 0.0
    %1912 = vmatprep.subr.mxu0 0.0
    %1913 = vmatpush1.msra.mxu0 0.0
    %1914 = vmatprep.subr.mxu0 0.0
    %1915 = vmatpush1.msra.mxu0 0.0
    %1916 = vmatprep.subr.mxu0 0.0
    %1917 = vmatpush1.msra.mxu0 0.0
    %1918 = vmatprep.subr.mxu0 0.0
    %1919 = vmatpush1.msra.mxu0 0.0
    %1920 = vmatprep.subr.mxu0 0.0
    %1921 = vmatpush1.msra.mxu0 0.0
    %1922 = vmatprep.subr.mxu0 0.0
    %1923 = vmatpush1.msra.mxu0 0.0
    %1924 = vmatprep.subr.mxu0 0.0
    %1925 = vmatpush1.msra.mxu0 0.0
    %1926 = vmatprep.subr.mxu0 0.0
    %1927 = vmatpush1.msra.mxu0 0.0
    %1928 = vmatprep.subr.mxu0 0.0
    %1929 = vmatpush1.msra.mxu0 0.0
    %1930 = vmatprep.subr.mxu0 0.0
    %1931 = vmatpush1.msra.mxu0 0.0
    %1932 = vmatprep.subr.mxu0 0.0
    %1933 = vmatpush1.msra.mxu0 0.0
    %1934 = vmatprep.subr.mxu0 0.0
    %1935 = vmatpush1.msra.mxu0 0.0
    %1936 = vmatprep.subr.mxu0 0.0
    %1937 = vmatpush1.msra.mxu0 0.0
    %1938 = vmatprep.subr.mxu0 0.0
    %1939 = vmatpush1.msra.mxu0 0.0
    %1940 = vmatprep.subr.mxu0 0.0
    %1941 = vmatpush1.msra.mxu0 0.0
    %1942 = vmatprep.subr.mxu0 0.0
    %1943 = vmatpush1.msra.mxu0 0.0
    %1944 = vmatprep.subr.mxu0 0.0
    %1945 = vmatpush1.msra.mxu0 0.0
    %1946 = vmatprep.subr.mxu0 0.0
    %1947 = vmatpush1.msra.mxu0 0.0
    %1948 = vmatprep.subr.mxu0 0.0
    %1949 = vmatpush1.msra.mxu0 0.0
    %1950 = vmatprep.subr.mxu0 0.0
    %1951 = vmatpush1.msra.mxu0 0.0
    %1952 = vmatprep.subr.mxu0 0.0
    %1953 = vmatpush1.msra.mxu0 0.0
    %1954 = vmatprep.subr.mxu0 0.0
    %1955 = vmatpush1.msra.mxu0 0.0
    %1956 = vmatprep.mubr.f32.mxu0 0.0
    %v1957 = vand.u32 %v1791, 4294901760
    %1958 = vmatmul.mubr.f32.gmra.mrb[0].mxu0 %v1957
    %v1959 = vpop.f32.mrb[0].mxu0
    %v1960 = vadd.f32 %v1869, %v1959
    %v1961 = vpop.f32.mrb[0].mxu0
    %1962 = vdwg.mxu0
    %1963 = vmatprep.subr.mxu0 0.0
    %v1964 = vand.u32 %v86, 4294901760
    %v1965 = vsub.f32 %v86, %v1964
    %1966 = vmatpush1.msra.mxu0 %v1965
    %1967 = vmatprep.subr.mxu0 0.0
    %v1968 = vand.u32 %v87, 4294901760
    %v1969 = vsub.f32 %v87, %v1968
    %1970 = vmatpush1.msra.mxu0 %v1969
    %1971 = vmatprep.subr.mxu0 0.0
    %v1972 = vand.u32 %v88, 4294901760
    %v1973 = vsub.f32 %v88, %v1972
    %1974 = vmatpush1.msra.mxu0 %v1973
    %1975 = vmatprep.subr.mxu0 0.0
    %v1976 = vand.u32 %v89, 4294901760
    %v1977 = vsub.f32 %v89, %v1976
    %1978 = vmatpush1.msra.mxu0 %v1977
    %1979 = vmatprep.subr.mxu0 0.0
    %1980 = vmatpush1.msra.mxu0 0.0
    %1981 = vmatprep.subr.mxu0 0.0
    %1982 = vmatpush1.msra.mxu0 0.0
    %1983 = vmatprep.subr.mxu0 0.0
    %1984 = vmatpush1.msra.mxu0 0.0
    %1985 = vmatprep.subr.mxu0 0.0
    %1986 = vmatpush1.msra.mxu0 0.0
    %1987 = vmatprep.subr.mxu0 0.0
    %1988 = vmatpush1.msra.mxu0 0.0
    %1989 = vmatprep.subr.mxu0 0.0
    %1990 = vmatpush1.msra.mxu0 0.0
    %1991 = vmatprep.subr.mxu0 0.0
    %1992 = vmatpush1.msra.mxu0 0.0
    %1993 = vmatprep.subr.mxu0 0.0
    %1994 = vmatpush1.msra.mxu0 0.0
    %1995 = vmatprep.subr.mxu0 0.0
    %1996 = vmatpush1.msra.mxu0 0.0
    %1997 = vmatprep.subr.mxu0 0.0
    %1998 = vmatpush1.msra.mxu0 0.0
    %1999 = vmatprep.subr.mxu0 0.0
    %2000 = vmatpush1.msra.mxu0 0.0
    %2001 = vmatprep.subr.mxu0 0.0
    %2002 = vmatpush1.msra.mxu0 0.0
    %2003 = vmatprep.subr.mxu0 0.0
    %2004 = vmatpush1.msra.mxu0 0.0
    %2005 = vmatprep.subr.mxu0 0.0
    %2006 = vmatpush1.msra.mxu0 0.0
    %2007 = vmatprep.subr.mxu0 0.0
    %2008 = vmatpush1.msra.mxu0 0.0
    %2009 = vmatprep.subr.mxu0 0.0
    %2010 = vmatpush1.msra.mxu0 0.0
    %2011 = vmatprep.subr.mxu0 0.0
    %2012 = vmatpush1.msra.mxu0 0.0
    %2013 = vmatprep.subr.mxu0 0.0
    %2014 = vmatpush1.msra.mxu0 0.0
    %2015 = vmatprep.subr.mxu0 0.0
    %2016 = vmatpush1.msra.mxu0 0.0
    %2017 = vmatprep.subr.mxu0 0.0
    %2018 = vmatpush1.msra.mxu0 0.0
    %2019 = vmatprep.subr.mxu0 0.0
    %2020 = vmatpush1.msra.mxu0 0.0
    %2021 = vmatprep.subr.mxu0 0.0
    %2022 = vmatpush1.msra.mxu0 0.0
    %2023 = vmatprep.subr.mxu0 0.0
    %2024 = vmatpush1.msra.mxu0 0.0
    %2025 = vmatprep.subr.mxu0 0.0
    %2026 = vmatpush1.msra.mxu0 0.0
    %2027 = vmatprep.subr.mxu0 0.0
    %2028 = vmatpush1.msra.mxu0 0.0
    %2029 = vmatprep.subr.mxu0 0.0
    %2030 = vmatpush1.msra.mxu0 0.0
    %2031 = vmatprep.subr.mxu0 0.0
    %2032 = vmatpush1.msra.mxu0 0.0
    %2033 = vmatprep.subr.mxu0 0.0
    %2034 = vmatpush1.msra.mxu0 0.0
    %2035 = vmatprep.mubr.f32.mxu0 0.0
    %v2036 = vand.u32 %v1791, 4294901760
    %v2037 = vsub.f32 %v1791, %v2036
    %2038 = vmatmul.mubr.f32.gmra.mrb[0].mxu0 %v2037
    %v2039 = vpop.f32.mrb[0].mxu0
    %v2040 = vadd.f32 %v1960, %v2039
    %v2041 = vpop.f32.mrb[0].mxu0
    %2042 = vdwg.mxu0
    %2043 = vmatprep.subr.mxu0 0.0
    %v2044 = vand.u32 %v86, 4294901760
    %2045 = vmatpush1.msra.mxu0 %v2044
    %2046 = vmatprep.subr.mxu0 0.0
    %v2047 = vand.u32 %v87, 4294901760
    %2048 = vmatpush1.msra.mxu0 %v2047
    %2049 = vmatprep.subr.mxu0 0.0
    %v2050 = vand.u32 %v88, 4294901760
    %2051 = vmatpush1.msra.mxu0 %v2050
    %2052 = vmatprep.subr.mxu0 0.0
    %v2053 = vand.u32 %v89, 4294901760
    %2054 = vmatpush1.msra.mxu0 %v2053
    %2055 = vmatprep.subr.mxu0 0.0
    %2056 = vmatpush1.msra.mxu0 0.0
    %2057 = vmatprep.subr.mxu0 0.0
    %2058 = vmatpush1.msra.mxu0 0.0
    %2059 = vmatprep.subr.mxu0 0.0
    %2060 = vmatpush1.msra.mxu0 0.0
    %2061 = vmatprep.subr.mxu0 0.0
    %2062 = vmatpush1.msra.mxu0 0.0
    %2063 = vmatprep.subr.mxu0 0.0
    %2064 = vmatpush1.msra.mxu0 0.0
    %2065 = vmatprep.subr.mxu0 0.0
    %2066 = vmatpush1.msra.mxu0 0.0
    %2067 = vmatprep.subr.mxu0 0.0
    %2068 = vmatpush1.msra.mxu0 0.0
    %2069 = vmatprep.subr.mxu0 0.0
    %2070 = vmatpush1.msra.mxu0 0.0
    %2071 = vmatprep.subr.mxu0 0.0
    %2072 = vmatpush1.msra.mxu0 0.0
    %2073 = vmatprep.subr.mxu0 0.0
    %2074 = vmatpush1.msra.mxu0 0.0
    %2075 = vmatprep.subr.mxu0 0.0
    %2076 = vmatpush1.msra.mxu0 0.0
    %2077 = vmatprep.subr.mxu0 0.0
    %2078 = vmatpush1.msra.mxu0 0.0
    %2079 = vmatprep.subr.mxu0 0.0
    %2080 = vmatpush1.msra.mxu0 0.0
    %2081 = vmatprep.subr.mxu0 0.0
    %2082 = vmatpush1.msra.mxu0 0.0
    %2083 = vmatprep.subr.mxu0 0.0
    %2084 = vmatpush1.msra.mxu0 0.0
    %2085 = vmatprep.subr.mxu0 0.0
    %2086 = vmatpush1.msra.mxu0 0.0
    %2087 = vmatprep.subr.mxu0 0.0
    %2088 = vmatpush1.msra.mxu0 0.0
    %2089 = vmatprep.subr.mxu0 0.0
    %2090 = vmatpush1.msra.mxu0 0.0
    %2091 = vmatprep.subr.mxu0 0.0
    %2092 = vmatpush1.msra.mxu0 0.0
    %2093 = vmatprep.subr.mxu0 0.0
    %2094 = vmatpush1.msra.mxu0 0.0
    %2095 = vmatprep.subr.mxu0 0.0
    %2096 = vmatpush1.msra.mxu0 0.0
    %2097 = vmatprep.subr.mxu0 0.0
    %2098 = vmatpush1.msra.mxu0 0.0
    %2099 = vmatprep.subr.mxu0 0.0
    %2100 = vmatpush1.msra.mxu0 0.0
    %2101 = vmatprep.subr.mxu0 0.0
    %2102 = vmatpush1.msra.mxu0 0.0
    %2103 = vmatprep.subr.mxu0 0.0
    %2104 = vmatpush1.msra.mxu0 0.0
    %2105 = vmatprep.subr.mxu0 0.0
    %2106 = vmatpush1.msra.mxu0 0.0
    %2107 = vmatprep.subr.mxu0 0.0
    %2108 = vmatpush1.msra.mxu0 0.0
    %2109 = vmatprep.subr.mxu0 0.0
    %2110 = vmatpush1.msra.mxu0 0.0
    %2111 = vmatprep.mubr.f32.mxu0 0.0
    %v2112 = vand.u32 %v1791, 4294901760
    %v2113 = vsub.f32 %v1791, %v2112
    %v2114 = vand.u32 %v2113, 4294901760
    %2115 = vmatmul.mubr.f32.gmra.mrb[0].mxu0 %v2114
    %v2116 = vpop.f32.mrb[0].mxu0
    %v2117 = vadd.f32 %v2040, %v2116
    %v2118 = vpop.f32.mrb[0].mxu0
    %2119 = vdwg.mxu0
    %2120 = vmatprep.subr.mxu0 0.0
    %v2121 = vand.u32 %v86, 4294901760
    %v2122 = vsub.f32 %v86, %v2121
    %v2123 = vand.u32 %v2122, 4294901760
    %2124 = vmatpush1.msra.mxu0 %v2123
    %2125 = vmatprep.subr.mxu0 0.0
    %v2126 = vand.u32 %v87, 4294901760
    %v2127 = vsub.f32 %v87, %v2126
    %v2128 = vand.u32 %v2127, 4294901760
    %2129 = vmatpush1.msra.mxu0 %v2128
    %2130 = vmatprep.subr.mxu0 0.0
    %v2131 = vand.u32 %v88, 4294901760
    %v2132 = vsub.f32 %v88, %v2131
    %v2133 = vand.u32 %v2132, 4294901760
    %2134 = vmatpush1.msra.mxu0 %v2133
    %2135 = vmatprep.subr.mxu0 0.0
    %v2136 = vand.u32 %v89, 4294901760
    %v2137 = vsub.f32 %v89, %v2136
    %v2138 = vand.u32 %v2137, 4294901760
    %2139 = vmatpush1.msra.mxu0 %v2138
    %2140 = vmatprep.subr.mxu0 0.0
    %2141 = vmatpush1.msra.mxu0 0.0
    %2142 = vmatprep.subr.mxu0 0.0
    %2143 = vmatpush1.msra.mxu0 0.0
    %2144 = vmatprep.subr.mxu0 0.0
    %2145 = vmatpush1.msra.mxu0 0.0
    %2146 = vmatprep.subr.mxu0 0.0
    %2147 = vmatpush1.msra.mxu0 0.0
    %2148 = vmatprep.subr.mxu0 0.0
    %2149 = vmatpush1.msra.mxu0 0.0
    %2150 = vmatprep.subr.mxu0 0.0
    %2151 = vmatpush1.msra.mxu0 0.0
    %2152 = vmatprep.subr.mxu0 0.0
    %2153 = vmatpush1.msra.mxu0 0.0
    %2154 = vmatprep.subr.mxu0 0.0
    %2155 = vmatpush1.msra.mxu0 0.0
    %2156 = vmatprep.subr.mxu0 0.0
    %2157 = vmatpush1.msra.mxu0 0.0
    %2158 = vmatprep.subr.mxu0 0.0
    %2159 = vmatpush1.msra.mxu0 0.0
    %2160 = vmatprep.subr.mxu0 0.0
    %2161 = vmatpush1.msra.mxu0 0.0
    %2162 = vmatprep.subr.mxu0 0.0
    %2163 = vmatpush1.msra.mxu0 0.0
    %2164 = vmatprep.subr.mxu0 0.0
    %2165 = vmatpush1.msra.mxu0 0.0
    %2166 = vmatprep.subr.mxu0 0.0
    %2167 = vmatpush1.msra.mxu0 0.0
    %2168 = vmatprep.subr.mxu0 0.0
    %2169 = vmatpush1.msra.mxu0 0.0
    %2170 = vmatprep.subr.mxu0 0.0
    %2171 = vmatpush1.msra.mxu0 0.0
    %2172 = vmatprep.subr.mxu0 0.0
    %2173 = vmatpush1.msra.mxu0 0.0
    %2174 = vmatprep.subr.mxu0 0.0
    %2175 = vmatpush1.msra.mxu0 0.0
    %2176 = vmatprep.subr.mxu0 0.0
    %2177 = vmatpush1.msra.mxu0 0.0
    %2178 = vmatprep.subr.mxu0 0.0
    %2179 = vmatpush1.msra.mxu0 0.0
    %2180 = vmatprep.subr.mxu0 0.0
    %2181 = vmatpush1.msra.mxu0 0.0
    %2182 = vmatprep.subr.mxu0 0.0
    %2183 = vmatpush1.msra.mxu0 0.0
    %2184 = vmatprep.subr.mxu0 0.0
    %2185 = vmatpush1.msra.mxu0 0.0
    %2186 = vmatprep.subr.mxu0 0.0
    %2187 = vmatpush1.msra.mxu0 0.0
    %2188 = vmatprep.subr.mxu0 0.0
    %2189 = vmatpush1.msra.mxu0 0.0
    %2190 = vmatprep.subr.mxu0 0.0
    %2191 = vmatpush1.msra.mxu0 0.0
    %2192 = vmatprep.subr.mxu0 0.0
    %2193 = vmatpush1.msra.mxu0 0.0
    %2194 = vmatprep.subr.mxu0 0.0
    %2195 = vmatpush1.msra.mxu0 0.0
    %2196 = vmatprep.mubr.f32.mxu0 0.0
    %v2197 = vand.u32 %v1791, 4294901760
    %2198 = vmatmul.mubr.f32.gmra.mrb[0].mxu0 %v2197
    %v2199 = vpop.f32.mrb[0].mxu0
    %v2200 = vadd.f32 %v2117, %v2199
    %v2201 = vpop.f32.mrb[0].mxu0
    %2202 = vdwg.mxu0
    %2203 = vmatprep.subr.mxu0 0.0
    %v2204 = vand.u32 %v86, 4294901760
    %2205 = vmatpush1.msra.mxu0 %v2204
    %2206 = vmatprep.subr.mxu0 0.0
    %v2207 = vand.u32 %v87, 4294901760
    %2208 = vmatpush1.msra.mxu0 %v2207
    %2209 = vmatprep.subr.mxu0 0.0
    %v2210 = vand.u32 %v88, 4294901760
    %2211 = vmatpush1.msra.mxu0 %v2210
    %2212 = vmatprep.subr.mxu0 0.0
    %v2213 = vand.u32 %v89, 4294901760
    %2214 = vmatpush1.msra.mxu0 %v2213
    %2215 = vmatprep.subr.mxu0 0.0
    %2216 = vmatpush1.msra.mxu0 0.0
    %2217 = vmatprep.subr.mxu0 0.0
    %2218 = vmatpush1.msra.mxu0 0.0
    %2219 = vmatprep.subr.mxu0 0.0
    %2220 = vmatpush1.msra.mxu0 0.0
    %2221 = vmatprep.subr.mxu0 0.0
    %2222 = vmatpush1.msra.mxu0 0.0
    %2223 = vmatprep.subr.mxu0 0.0
    %2224 = vmatpush1.msra.mxu0 0.0
    %2225 = vmatprep.subr.mxu0 0.0
    %2226 = vmatpush1.msra.mxu0 0.0
    %2227 = vmatprep.subr.mxu0 0.0
    %2228 = vmatpush1.msra.mxu0 0.0
    %2229 = vmatprep.subr.mxu0 0.0
    %2230 = vmatpush1.msra.mxu0 0.0
    %2231 = vmatprep.subr.mxu0 0.0
    %2232 = vmatpush1.msra.mxu0 0.0
    %2233 = vmatprep.subr.mxu0 0.0
    %2234 = vmatpush1.msra.mxu0 0.0
    %2235 = vmatprep.subr.mxu0 0.0
    %2236 = vmatpush1.msra.mxu0 0.0
    %2237 = vmatprep.subr.mxu0 0.0
    %2238 = vmatpush1.msra.mxu0 0.0
    %2239 = vmatprep.subr.mxu0 0.0
    %2240 = vmatpush1.msra.mxu0 0.0
    %2241 = vmatprep.subr.mxu0 0.0
    %2242 = vmatpush1.msra.mxu0 0.0
    %2243 = vmatprep.subr.mxu0 0.0
    %2244 = vmatpush1.msra.mxu0 0.0
    %2245 = vmatprep.subr.mxu0 0.0
    %2246 = vmatpush1.msra.mxu0 0.0
    %2247 = vmatprep.subr.mxu0 0.0
    %2248 = vmatpush1.msra.mxu0 0.0
    %2249 = vmatprep.subr.mxu0 0.0
    %2250 = vmatpush1.msra.mxu0 0.0
    %2251 = vmatprep.subr.mxu0 0.0
    %2252 = vmatpush1.msra.mxu0 0.0
    %2253 = vmatprep.subr.mxu0 0.0
    %2254 = vmatpush1.msra.mxu0 0.0
    %2255 = vmatprep.subr.mxu0 0.0
    %2256 = vmatpush1.msra.mxu0 0.0
    %2257 = vmatprep.subr.mxu0 0.0
    %2258 = vmatpush1.msra.mxu0 0.0
    %2259 = vmatprep.subr.mxu0 0.0
    %2260 = vmatpush1.msra.mxu0 0.0
    %2261 = vmatprep.subr.mxu0 0.0
    %2262 = vmatpush1.msra.mxu0 0.0
    %2263 = vmatprep.subr.mxu0 0.0
    %2264 = vmatpush1.msra.mxu0 0.0
    %2265 = vmatprep.subr.mxu0 0.0
    %2266 = vmatpush1.msra.mxu0 0.0
    %2267 = vmatprep.subr.mxu0 0.0
    %2268 = vmatpush1.msra.mxu0 0.0
    %2269 = vmatprep.subr.mxu0 0.0
    %2270 = vmatpush1.msra.mxu0 0.0
    %2271 = vmatprep.mubr.f32.mxu0 0.0
    %v2272 = vand.u32 %v1791, 4294901760
    %2273 = vmatmul.mubr.f32.gmra.mrb[0].mxu0 %v2272
    %v2274 = vpop.f32.mrb[0].mxu0
    %v2275 = vadd.f32 %v2200, %v2274
    %v2276 = vpop.f32.mrb[0].mxu0
    %2277 = vdwg.mxu0
    %v2278 = vadd.f32 %v2275, %v1082
    %v2279 = vlaneseq
    %v2280 = vshrl.u32 %v2279, 7
    %v2281 = vsub.s32 0, %v2280
    %v2282 = vrot.slane %v92, %v2281
    %v2283 = vadd.f32 %v2278, %v2282
    %v2284 = vxor.u32 %v2283, 2147483648
    %v2285 = vmul.f32 %v2284, 1.442695
    %v2286 = vpow.pop %v2285
    %v2287 = vadd.f32 %v2286, 1.0
    %v2288 = vrcp.pop %v2287
    %v2289 = vmul.f32 1.0, %v2288
    %v2290 = vtanh.pop %v2283
    %2292 = vrot.lane.b32.xlu0 %v1088, 32
    %v2293 = vpop.permute.xlu0 %2292
    %v2295 = vmul.f32 %v2289, %v2293
    %2297 = vrot.lane.b32.xlu0 %v2290, 64
    %v2298 = vpop.permute.xlu0 %2297
    %v2300 = vmul.f32 %v2289, %v2298
    %2302 = vrot.lane.b32.xlu0 %v2300, 32
    %v2303 = vpop.permute.xlu0 %2302
    %v2305 = vadd.f32 %v2295, %v2303
    %v2306 = vtanh.pop %v2305
    %2308 = vrot.lane.b32.xlu0 %v2306, 64
    %v2309 = vpop.permute.xlu0 %2308
    %v2311 = vmul.f32 %v2289, %v2309
    %2313 = vrot.lane.b32.xlu0 %v2311, 40
    %v2314 = vpop.permute.xlu0 %2313
    %2317 = vrot.lane.b32.xlu0 %v2305, 8
    %v2318 = vpop.permute.xlu0 %2317
    %vm2320 = vcmask 64512
    %v2321 = vsel %vm2320, %v1703, %v2314
    %vm2322 = vcmask 326656
    %v2323 = vsel %vm2322, %v2321, %v2318
    %vm2324 = vcmask 588800
    %v2325 = vsel %vm2324, %v2323, 0.0
    %2326 = vst [vmem:[#allocation10] sm:$0x3] %v2325
    // Predicated region
    $region46: #{tpu_custom_call.1} parent=1 // pred_check
      _
    $region47: #{tpu_custom_call.1} parent=1 // pred_check_branch
      %2328 = sbr.rel (0) target = $region49
    $region48: #{tpu_custom_call.1} parent=1 // pred_region
      %s2330 = ssub.s32 32, 32
      %2331 = vsyncadd [#allocation4], %s2330
      %s2333 = sshll.u32 [#allocation10], 4
      %s2334 = int_to_ptr.vmem [resolvable:$true] %s2333
      %2336 = dma.vmem_to_hbm [thread:$0]  %s2334, 32, %s7, [#allocation4]
    $region49: #{tpu_custom_call.1} parent=1 // pred_fallthru
      _
    // Predicated region
    $region50: #{tpu_custom_call.1} parent=1 // pred_check
      _
    $region51: #{tpu_custom_call.1} parent=1 // pred_check_branch
      %2338 = sbr.rel (0) target = $region53
    $region52: #{tpu_custom_call.1} parent=1 // pred_region
      %2339 = dma.done [#allocation4], 32
    $region53: #{tpu_custom_call.1} parent=1 // pred_fallthru
      _
    %2340 = vsyncpa [#allocation3], 1
    %2341 = vsyncpa [#allocation6], 1
    %2342 = vsyncpa [#allocation9], 1
    %2343 = vsyncpa [#allocation4], 1

</llo_original>
